<compile_context>
chip_gen: v7x
topology: tpu7x:2x2x1
jax: 0.10.0
libtpu: 0.0.40
codegen_flags: <defaults>
</compile_context>

<pallas_src>
import functools

import jax
import jax.numpy as jnp
from jax.experimental import pallas as pl
from jax.experimental.pallas import tpu as pltpu


def _softplus(x):
    # stable softplus matching F.softplus (beta=1)
    return jnp.maximum(x, 0.0) + jnp.log(1.0 + jnp.exp(-jnp.abs(x)))


def _softmax(x, axis):
    x = x - jnp.max(x, axis=axis, keepdims=True)
    e = jnp.exp(x)
    return e / jnp.sum(e, axis=axis, keepdims=True)


def _sigmoid(x):
    return 1.0 / (1.0 + jnp.exp(-x))


def ntm_read_kernel(hid_ref, w_t_ref, b_ref, mem_eps_t_ref, mem_ref,
                    inv_mnorm_ref, w_init_ref, out_ref, w_all_sc,
                    *, T, B, M, N, OUTW):
    TB = T * B
    hid = hid_ref[...]               # (T*B, C)  all timesteps, flattened
    w_t = w_t_ref[...]               # (C, L)    fc weight, pre-transposed
    b = b_ref[...]                   # (1, L)
    mem_eps_t = mem_eps_t_ref[...]   # (M, N)    (memory + 1e-16)^T
    mem = mem_ref[...]               # (N, M)    raw memory (for the read)
    inv_mnorm = inv_mnorm_ref[...]   # (1, N)    1 / max(||mem_row + eps||, 1e-8)

    # ---------------- batched pre-pass (recurrence independent) -------------
    # fc_read for every timestep at once: one well-shaped MXU matmul.
    o = jnp.dot(hid, w_t, preferred_element_type=jnp.float32) + b   # (T*B, L)

    # split_cols with read_lens = [M, 1, 1, 3, 1]
    k = o[:, :M]                                   # (T*B, M)
    beta = _softplus(o[:, M:M + 1])                # (T*B, 1)
    g = _sigmoid(o[:, M + 1:M + 2])                # (T*B, 1)
    s = _softmax(o[:, M + 2:M + 5], axis=1)        # (T*B, 3)
    gamma = 1.0 + _softplus(o[:, M + 5:M + 6])     # (T*B, 1)

    # Content addressing (cosine similarity) for every timestep at once.
    k_e = k + 1e-16
    num = jnp.dot(k_e, mem_eps_t, preferred_element_type=jnp.float32)  # (T*B, N)
    k_norm = jnp.sqrt(jnp.sum(k_e * k_e, axis=1, keepdims=True))       # (T*B, 1)
    inv_knorm = 1.0 / jnp.maximum(k_norm, 1e-8)
    wc = _softmax(beta * (num * inv_knorm * inv_mnorm), axis=1)        # (T*B, N)

    # ---------------- serial recurrence: only the w-carry ops ----------------
    w_prev = w_init_ref[...]                       # (B, N)
    for t in range(T):                             # static unroll (T small)
        lo, hi = t * B, (t + 1) * B

        # interpolation with the previous read weights
        wg = g[lo:hi] * wc[lo:hi] + (1.0 - g[lo:hi]) * w_prev          # (B, N)

        # circular convolution (3-tap shift), matches F.conv1d on
        # cat([w[-1:], w, w[:1]]):  w_hat[i] = w[(i-1)%N]*s0 + w[i]*s1 + w[(i+1)%N]*s2
        s_t = s[lo:hi]
        w_left = jnp.roll(wg, 1, axis=1)
        w_right = jnp.roll(wg, -1, axis=1)
        w_hat = w_left * s_t[:, 0:1] + wg * s_t[:, 1:2] + w_right * s_t[:, 2:3]

        # sharpening: w_hat ** gamma, renormalize (exact divide: carried state)
        w_hat = jnp.maximum(w_hat, 1e-30)          # guard log(0)
        w_pow = jnp.exp(gamma[lo:hi] * jnp.log(w_hat))
        w_new = w_pow / (jnp.sum(w_pow, axis=1, keepdims=True) + 1e-16)

        w_all_sc[lo:hi, :] = w_new                 # collect for deferred read
        w_prev = w_new

    # ---------------- deferred read: one batched matmul ----------------------
    w_all = w_all_sc[...]                                              # (T*B, N)
    r_all = jnp.dot(w_all, mem, preferred_element_type=jnp.float32)    # (T*B, M)

    # single lane-dense writeback: [r | w | zero pad] -> (T*B, OUTW)
    if OUTW > M + N:
        pad = jnp.zeros((TB, OUTW - M - N), jnp.float32)
        packed = jnp.concatenate([r_all, w_all, pad], axis=1)
    else:
        packed = jnp.concatenate([r_all, w_all], axis=1)
    out_ref[...] = packed.astype(out_ref.dtype)


@jax.jit
def ntm_read_head_seq(hid_seq, w_init, memory, fc_w_t, fc_b):
    """Run T read-head steps in ONE pallas_call (single grid step).

    hid_seq : (T, B, C), w_init : (B, N), memory : (N, M),
    fc_w_t  : (C, L) pre-transposed fc weight, fc_b : (L,).
    Returns (r_seq (T, B, M), w_seq (T, B, N)).
    """
    T, B, C = hid_seq.shape
    N, M = memory.shape
    L = fc_w_t.shape[1]
    TB = T * B
    OUTW = max(128, ((M + N + 127) // 128) * 128)   # lane-dense output width

    # Batch/step-independent pre-computation (done once, outside the kernel):
    #  - eps-adjusted, transposed memory for the content matmul
    #  - clamped inverse memory-row norms
    mem_eps = memory + 1e-16
    mem_eps_t = jnp.transpose(mem_eps)                               # (M, N)
    m_norm = jnp.sqrt(jnp.sum(mem_eps * mem_eps, axis=1))            # (N,)
    inv_mnorm = (1.0 / jnp.maximum(m_norm, 1e-8)).reshape(1, N)
    b2 = fc_b.reshape(1, L)
    hid2 = hid_seq.reshape(TB, C)

    kernel = functools.partial(ntm_read_kernel, T=T, B=B, M=M, N=N, OUTW=OUTW)
    out = pl.pallas_call(
        kernel,
        out_shape=jax.ShapeDtypeStruct((TB, OUTW), jnp.float32),
        grid=(1,),
        in_specs=[
            pl.BlockSpec((TB, C), lambda i: (0, 0)),   # hid (all timesteps)
            pl.BlockSpec((C, L), lambda i: (0, 0)),    # fc W^T
            pl.BlockSpec((1, L), lambda i: (0, 0)),    # fc bias
            pl.BlockSpec((M, N), lambda i: (0, 0)),    # (mem + eps)^T
            pl.BlockSpec((N, M), lambda i: (0, 0)),    # memory (raw)
            pl.BlockSpec((1, N), lambda i: (0, 0)),    # 1 / ||mem row||
            pl.BlockSpec((B, N), lambda i: (0, 0)),    # w_init
        ],
        out_specs=pl.BlockSpec((TB, OUTW), lambda i: (0, 0)),
        scratch_shapes=[pltpu.VMEM((TB, N), jnp.float32)],   # collected w's
        compiler_params=pltpu.CompilerParams(
            dimension_semantics=("arbitrary",)),
    )(hid2, fc_w_t, b2, mem_eps_t, memory, inv_mnorm, w_init)

    r_seq = out[:, :M].reshape(T, B, M)
    w_seq = out[:, M:M + N].reshape(T, B, N)
    return r_seq, w_seq


def ntm_read_head(hid, w_pre, memory, fc_w, fc_b):
    """Single-step forward matching NTMReadHead.forward(hid, w_pre) -> (r, w)."""
    r_seq, w_seq = ntm_read_head_seq(hid[None], w_pre, memory,
                                     jnp.transpose(fc_w), fc_b)
    return r_seq[0], w_seq[0]


def ref_forward(hid, w_pre, memory, fc_w, fc_b):
    """Pure-JAX reference mirroring the PyTorch NTM read head (one step)."""
    N, M = memory.shape
    o = hid @ fc_w.T + fc_b
    k, beta, g, s, gamma = (o[:, :M], o[:, M:M + 1], o[:, M + 1:M + 2],
                            o[:, M + 2:M + 5], o[:, M + 5:M + 6])
    beta = jax.nn.softplus(beta)
    g = jax.nn.sigmoid(g)
    s = jax.nn.softmax(s, axis=1)
    gamma = 1.0 + jax.nn.softplus(gamma)
    mem_e = memory + 1e-16
    k_e = k + 1e-16
    num = k_e @ mem_e.T
    den = (jnp.maximum(jnp.linalg.norm(k_e, axis=1, keepdims=True), 1e-8) *
           jnp.maximum(jnp.linalg.norm(mem_e, axis=1), 1e-8)[None, :])
    wc = jax.nn.softmax(beta * num / den, axis=1)
    wg = g * wc + (1.0 - g) * w_pre
    t = jnp.concatenate([wg[:, -1:], wg, wg[:, :1]], axis=1)
    w_hat = (t[:, :N] * s[:, 0:1] + t[:, 1:N + 1] * s[:, 1:2]
             + t[:, 2:N + 2] * s[:, 2:3])
    w_pow = w_hat ** gamma
    w = w_pow / (jnp.sum(w_pow, axis=1, keepdims=True) + 1e-16)
    r = w @ memory
    return r, w


if __name__ == "__main__":
    B, cdim = 2, 32           # batch, controller hidden dim
    N, M = 16, 32             # memory: N locations x M word size
    L = M + 1 + 1 + 3 + 1     # sum(read_lens) = 38
    T = 8                     # timesteps folded into one pallas_call

    key = jax.random.PRNGKey(0)
    k1, k2, k3, k4 = jax.random.split(key, 4)

    bound = 1.0 / jnp.sqrt(cdim)
    fc_w = jax.random.uniform(k1, (L, cdim), jnp.float32, -bound, bound)
    fc_b = jax.random.uniform(k2, (L,), jnp.float32, -bound, bound)
    memory = jax.random.normal(k3, (N, M), jnp.float32) * 0.1
    hid_seq = jax.random.normal(k4, (T, B, cdim), jnp.float32)
    w_init = jnp.zeros((B, N), jnp.float32)   # create_new_state(bsz)

    # weight is pre-transposed ONCE outside the recurrent loop.
    fc_w_t = jnp.transpose(fc_w)

    r_seq, w_seq = ntm_read_head_seq(hid_seq, w_init, memory, fc_w_t, fc_b)
    jax.block_until_ready((r_seq, w_seq))

    # exact pure-JAX recurrence as reference
    rs, ws = [], []
    w_ref = w_init
    for t in range(T):
        r_ref, w_ref = ref_forward(hid_seq[t], w_ref, memory, fc_w, fc_b)
        rs.append(r_ref)
        ws.append(w_ref)
    r_ref_seq = jnp.stack(rs)
    w_ref_seq = jnp.stack(ws)

    # Exact divides throughout -> tight tolerances (only fp32 accumulation-
    # order differences between MXU and the XLA reference remain).
    TOL = dict(rtol=1e-3, atol=1e-5)
    assert r_seq.shape == (T, B, M) and w_seq.shape == (T, B, N)
    assert jnp.allclose(r_seq, r_ref_seq, **TOL), "read vector mismatch"
    assert jnp.allclose(w_seq, w_ref_seq, **TOL), "read weights mismatch"
    assert bool(jnp.all(w_seq >= 0.0)), "negative read weight"
    assert jnp.allclose(jnp.sum(w_seq, axis=-1), 1.0, atol=1e-4), \
        "read weights do not sum to 1"

    # single-step path (module-equivalent forward(hid, w_pre) -> (r, w))
    r1, w1 = ntm_read_head(hid_seq[0], w_init, memory, fc_w, fc_b)
    jax.block_until_ready((r1, w1))
    r1_ref, w1_ref = ref_forward(hid_seq[0], w_init, memory, fc_w, fc_b)
    assert jnp.allclose(r1, r1_ref, **TOL), "single-step read mismatch"
    assert jnp.allclose(w1, w1_ref, **TOL), "single-step weights mismatch"

    print("KERNEL_OK")
</pallas_src>

<mosaic_0001>
module attributes {stable_mosaic.version = 11 : i64} {
  func.func @ntm_read_kernel(%arg0: i32, %arg1: memref<16x32xf32, #tpu.memory_space<vmem>>, %arg2: memref<32x38xf32, #tpu.memory_space<vmem>>, %arg3: memref<1x38xf32, #tpu.memory_space<vmem>>, %arg4: memref<32x16xf32, #tpu.memory_space<vmem>>, %arg5: memref<16x32xf32, #tpu.memory_space<vmem>>, %arg6: memref<1x16xf32, #tpu.memory_space<vmem>>, %arg7: memref<2x16xf32, #tpu.memory_space<vmem>>, %arg8: memref<16x128xf32, #tpu.memory_space<vmem>>, %arg9: memref<16x16xf32, #tpu.memory_space<vmem>>) attributes {dimension_semantics = [#tpu.dimension_semantics<arbitrary>], iteration_bounds = array<i64: 1>, scalar_prefetch = 0 : i64, scratch_operands = 1 : i64, tpu.core_type = #tpu.core_type<tc>, window_params = [{pipeline_mode = #tpu.pipeline_mode<synchronous>, transform_indices = @transform_0, window_bounds = array<i64: 16, 32>}, {pipeline_mode = #tpu.pipeline_mode<synchronous>, transform_indices = @transform_1, window_bounds = array<i64: 32, 38>}, {pipeline_mode = #tpu.pipeline_mode<synchronous>, transform_indices = @transform_2, window_bounds = array<i64: 1, 38>}, {pipeline_mode = #tpu.pipeline_mode<synchronous>, transform_indices = @transform_3, window_bounds = array<i64: 32, 16>}, {pipeline_mode = #tpu.pipeline_mode<synchronous>, transform_indices = @transform_4, window_bounds = array<i64: 16, 32>}, {pipeline_mode = #tpu.pipeline_mode<synchronous>, transform_indices = @transform_5, window_bounds = array<i64: 1, 16>}, {pipeline_mode = #tpu.pipeline_mode<synchronous>, transform_indices = @transform_6, window_bounds = array<i64: 2, 16>}, {pipeline_mode = #tpu.pipeline_mode<synchronous>, transform_indices = @transform_7, window_bounds = array<i64: 16, 128>}]} {
    %c0 = arith.constant 0 : index
    %c0_0 = arith.constant 0 : index
    %0 = vector.load %arg1[%c0, %c0_0] : memref<16x32xf32, #tpu.memory_space<vmem>>, vector<16x32xf32>
    %c0_1 = arith.constant 0 : index
    %c0_2 = arith.constant 0 : index
    %1 = vector.load %arg2[%c0_1, %c0_2] : memref<32x38xf32, #tpu.memory_space<vmem>>, vector<32x38xf32>
    %c0_3 = arith.constant 0 : index
    %c0_4 = arith.constant 0 : index
    %2 = vector.load %arg3[%c0_3, %c0_4] : memref<1x38xf32, #tpu.memory_space<vmem>>, vector<1x38xf32>
    %c0_5 = arith.constant 0 : index
    %c0_6 = arith.constant 0 : index
    %3 = vector.load %arg4[%c0_5, %c0_6] : memref<32x16xf32, #tpu.memory_space<vmem>>, vector<32x16xf32>
    %c0_7 = arith.constant 0 : index
    %c0_8 = arith.constant 0 : index
    %4 = vector.load %arg5[%c0_7, %c0_8] : memref<16x32xf32, #tpu.memory_space<vmem>>, vector<16x32xf32>
    %c0_9 = arith.constant 0 : index
    %c0_10 = arith.constant 0 : index
    %5 = vector.load %arg6[%c0_9, %c0_10] : memref<1x16xf32, #tpu.memory_space<vmem>>, vector<1x16xf32>
    %cst = arith.constant dense<0.000000e+00> : vector<16x38xf32>
    %6 = tpu.matmul %0, %1, %cst {dimension_numbers = #tpu.dot_dimension_numbers<[1], [0], [0], [1], [0, 0, 1, 1], [], []>} : vector<16x32xf32>, vector<32x38xf32>, vector<16x38xf32> -> vector<16x38xf32>
    %7 = vector.broadcast %2 : vector<1x38xf32> to vector<16x38xf32>
    %8 = arith.addf %6, %7 : vector<16x38xf32>
    %9 = vector.extract_strided_slice %8 {offsets = [0, 0], sizes = [16, 32], strides = [1, 1]} : vector<16x38xf32> to vector<16x32xf32>
    %10 = vector.extract_strided_slice %8 {offsets = [0, 32], sizes = [16, 1], strides = [1, 1]} : vector<16x38xf32> to vector<16x1xf32>
    %cst_11 = arith.constant 0.000000e+00 : f32
    %11 = vector.broadcast %cst_11 : f32 to vector<16x1xf32>
    %12 = arith.maximumf %10, %11 : vector<16x1xf32>
    %13 = math.absf %10 : vector<16x1xf32>
    %cst_12 = arith.constant 0.000000e+00 : f32
    %14 = vector.broadcast %cst_12 : f32 to vector<16x1xf32>
    %15 = arith.subf %14, %13 : vector<16x1xf32>
    %16 = math.exp %15 : vector<16x1xf32>
    %cst_13 = arith.constant 1.000000e+00 : f32
    %17 = vector.broadcast %cst_13 : f32 to vector<16x1xf32>
    %18 = arith.addf %17, %16 : vector<16x1xf32>
    %19 = math.log %18 : vector<16x1xf32>
    %20 = arith.addf %12, %19 : vector<16x1xf32>
    %21 = vector.extract_strided_slice %8 {offsets = [0, 33], sizes = [16, 1], strides = [1, 1]} : vector<16x38xf32> to vector<16x1xf32>
    %cst_14 = arith.constant 0.000000e+00 : f32
    %22 = vector.broadcast %cst_14 : f32 to vector<16x1xf32>
    %23 = arith.subf %22, %21 : vector<16x1xf32>
    %24 = math.exp %23 : vector<16x1xf32>
    %cst_15 = arith.constant 1.000000e+00 : f32
    %25 = vector.broadcast %cst_15 : f32 to vector<16x1xf32>
    %26 = arith.addf %25, %24 : vector<16x1xf32>
    %cst_16 = arith.constant 1.000000e+00 : f32
    %27 = vector.broadcast %cst_16 : f32 to vector<16x1xf32>
    %28 = arith.divf %27, %26 : vector<16x1xf32>
    %29 = vector.extract_strided_slice %8 {offsets = [0, 34], sizes = [16, 3], strides = [1, 1]} : vector<16x38xf32> to vector<16x3xf32>
    %cst_17 = arith.constant dense<0xFF800000> : vector<16xf32>
    %30 = vector.multi_reduction <maximumf>, %29, %cst_17 [1] : vector<16x3xf32> to vector<16xf32>
    %31 = vector.shape_cast %30 : vector<16xf32> to vector<16x1xf32>
    %32 = vector.broadcast %31 : vector<16x1xf32> to vector<16x3xf32>
    %33 = arith.subf %29, %32 : vector<16x3xf32>
    %34 = math.exp %33 : vector<16x3xf32>
    %cst_18 = arith.constant dense<0.000000e+00> : vector<16xf32>
    %35 = vector.multi_reduction <add>, %34, %cst_18 [1] : vector<16x3xf32> to vector<16xf32>
    %36 = vector.shape_cast %35 : vector<16xf32> to vector<16x1xf32>
    %37 = vector.broadcast %36 : vector<16x1xf32> to vector<16x3xf32>
    %38 = arith.divf %34, %37 : vector<16x3xf32>
    %39 = vector.extract_strided_slice %8 {offsets = [0, 37], sizes = [16, 1], strides = [1, 1]} : vector<16x38xf32> to vector<16x1xf32>
    %cst_19 = arith.constant 0.000000e+00 : f32
    %40 = vector.broadcast %cst_19 : f32 to vector<16x1xf32>
    %41 = arith.maximumf %39, %40 : vector<16x1xf32>
    %42 = math.absf %39 : vector<16x1xf32>
    %cst_20 = arith.constant 0.000000e+00 : f32
    %43 = vector.broadcast %cst_20 : f32 to vector<16x1xf32>
    %44 = arith.subf %43, %42 : vector<16x1xf32>
    %45 = math.exp %44 : vector<16x1xf32>
    %cst_21 = arith.constant 1.000000e+00 : f32
    %46 = vector.broadcast %cst_21 : f32 to vector<16x1xf32>
    %47 = arith.addf %46, %45 : vector<16x1xf32>
    %48 = math.log %47 : vector<16x1xf32>
    %49 = arith.addf %41, %48 : vector<16x1xf32>
    %cst_22 = arith.constant 1.000000e+00 : f32
    %50 = vector.broadcast %cst_22 : f32 to vector<16x1xf32>
    %51 = arith.addf %50, %49 : vector<16x1xf32>
    %cst_23 = arith.constant 1.000000e-16 : f32
    %52 = vector.broadcast %cst_23 : f32 to vector<16x32xf32>
    %53 = arith.addf %9, %52 : vector<16x32xf32>
    %cst_24 = arith.constant dense<0.000000e+00> : vector<16x16xf32>
    %54 = tpu.matmul %53, %3, %cst_24 {dimension_numbers = #tpu.dot_dimension_numbers<[1], [0], [0], [1], [0, 0, 1, 1], [], []>} : vector<16x32xf32>, vector<32x16xf32>, vector<16x16xf32> -> vector<16x16xf32>
    %55 = arith.mulf %53, %53 : vector<16x32xf32>
    %cst_25 = arith.constant dense<0.000000e+00> : vector<16xf32>
    %56 = vector.multi_reduction <add>, %55, %cst_25 [1] : vector<16x32xf32> to vector<16xf32>
    %57 = vector.shape_cast %56 : vector<16xf32> to vector<16x1xf32>
    %58 = math.sqrt %57 : vector<16x1xf32>
    %cst_26 = arith.constant 9.99999993E-9 : f32
    %59 = vector.broadcast %cst_26 : f32 to vector<16x1xf32>
    %60 = arith.maximumf %58, %59 : vector<16x1xf32>
    %cst_27 = arith.constant 1.000000e+00 : f32
    %61 = vector.broadcast %cst_27 : f32 to vector<16x1xf32>
    %62 = arith.divf %61, %60 : vector<16x1xf32>
    %63 = vector.broadcast %62 : vector<16x1xf32> to vector<16x16xf32>
    %64 = arith.mulf %54, %63 : vector<16x16xf32>
    %65 = vector.broadcast %5 : vector<1x16xf32> to vector<16x16xf32>
    %66 = arith.mulf %64, %65 : vector<16x16xf32>
    %67 = vector.broadcast %20 : vector<16x1xf32> to vector<16x16xf32>
    %68 = arith.mulf %67, %66 : vector<16x16xf32>
    %cst_28 = arith.constant dense<0xFF800000> : vector<16xf32>
    %69 = vector.multi_reduction <maximumf>, %68, %cst_28 [1] : vector<16x16xf32> to vector<16xf32>
    %70 = vector.shape_cast %69 : vector<16xf32> to vector<16x1xf32>
    %71 = vector.broadcast %70 : vector<16x1xf32> to vector<16x16xf32>
    %72 = arith.subf %68, %71 : vector<16x16xf32>
    %73 = math.exp %72 : vector<16x16xf32>
    %cst_29 = arith.constant dense<0.000000e+00> : vector<16xf32>
    %74 = vector.multi_reduction <add>, %73, %cst_29 [1] : vector<16x16xf32> to vector<16xf32>
    %75 = vector.shape_cast %74 : vector<16xf32> to vector<16x1xf32>
    %76 = vector.broadcast %75 : vector<16x1xf32> to vector<16x16xf32>
    %77 = arith.divf %73, %76 : vector<16x16xf32>
    %c0_30 = arith.constant 0 : index
    %c0_31 = arith.constant 0 : index
    %78 = vector.load %arg7[%c0_30, %c0_31] : memref<2x16xf32, #tpu.memory_space<vmem>>, vector<2x16xf32>
    %79 = vector.extract_strided_slice %28 {offsets = [0, 0], sizes = [2, 1], strides = [1, 1]} : vector<16x1xf32> to vector<2x1xf32>
    %80 = vector.extract_strided_slice %77 {offsets = [0, 0], sizes = [2, 16], strides = [1, 1]} : vector<16x16xf32> to vector<2x16xf32>
    %81 = vector.broadcast %79 : vector<2x1xf32> to vector<2x16xf32>
    %82 = arith.mulf %81, %80 : vector<2x16xf32>
    %83 = vector.extract_strided_slice %28 {offsets = [0, 0], sizes = [2, 1], strides = [1, 1]} : vector<16x1xf32> to vector<2x1xf32>
    %cst_32 = arith.constant 1.000000e+00 : f32
    %84 = vector.broadcast %cst_32 : f32 to vector<2x1xf32>
    %85 = arith.subf %84, %83 : vector<2x1xf32>
    %86 = vector.broadcast %85 : vector<2x1xf32> to vector<2x16xf32>
    %87 = arith.mulf %86, %78 : vector<2x16xf32>
    %88 = arith.addf %82, %87 : vector<2x16xf32>
    %89 = vector.extract_strided_slice %38 {offsets = [0, 0], sizes = [2, 3], strides = [1, 1]} : vector<16x3xf32> to vector<2x3xf32>
    %90 = vector.extract_strided_slice %88 {offsets = [0, 15], sizes = [2, 1], strides = [1, 1]} : vector<2x16xf32> to vector<2x1xf32>
    %91 = vector.extract_strided_slice %88 {offsets = [0, 0], sizes = [2, 15], strides = [1, 1]} : vector<2x16xf32> to vector<2x15xf32>
    %92 = tpu.concatenate %90, %91 in 1 : vector<2x1xf32>, vector<2x15xf32> -> vector<2x16xf32>
    %93 = vector.extract_strided_slice %88 {offsets = [0, 1], sizes = [2, 15], strides = [1, 1]} : vector<2x16xf32> to vector<2x15xf32>
    %94 = vector.extract_strided_slice %88 {offsets = [0, 0], sizes = [2, 1], strides = [1, 1]} : vector<2x16xf32> to vector<2x1xf32>
    %95 = tpu.concatenate %93, %94 in 1 : vector<2x15xf32>, vector<2x1xf32> -> vector<2x16xf32>
    %96 = vector.extract_strided_slice %89 {offsets = [0, 0], sizes = [2, 1], strides = [1, 1]} : vector<2x3xf32> to vector<2x1xf32>
    %97 = vector.broadcast %96 : vector<2x1xf32> to vector<2x16xf32>
    %98 = arith.mulf %92, %97 : vector<2x16xf32>
    %99 = vector.extract_strided_slice %89 {offsets = [0, 1], sizes = [2, 1], strides = [1, 1]} : vector<2x3xf32> to vector<2x1xf32>
    %100 = vector.broadcast %99 : vector<2x1xf32> to vector<2x16xf32>
    %101 = arith.mulf %88, %100 : vector<2x16xf32>
    %102 = arith.addf %98, %101 : vector<2x16xf32>
    %103 = vector.extract_strided_slice %89 {offsets = [0, 2], sizes = [2, 1], strides = [1, 1]} : vector<2x3xf32> to vector<2x1xf32>
    %104 = vector.broadcast %103 : vector<2x1xf32> to vector<2x16xf32>
    %105 = arith.mulf %95, %104 : vector<2x16xf32>
    %106 = arith.addf %102, %105 : vector<2x16xf32>
    %cst_33 = arith.constant 1.000000e-30 : f32
    %107 = vector.broadcast %cst_33 : f32 to vector<2x16xf32>
    %108 = arith.maximumf %106, %107 : vector<2x16xf32>
    %109 = vector.extract_strided_slice %51 {offsets = [0, 0], sizes = [2, 1], strides = [1, 1]} : vector<16x1xf32> to vector<2x1xf32>
    %110 = math.log %108 : vector<2x16xf32>
    %111 = vector.broadcast %109 : vector<2x1xf32> to vector<2x16xf32>
    %112 = arith.mulf %111, %110 : vector<2x16xf32>
    %113 = math.exp %112 : vector<2x16xf32>
    %cst_34 = arith.constant dense<0.000000e+00> : vector<2xf32>
    %114 = vector.multi_reduction <add>, %113, %cst_34 [1] : vector<2x16xf32> to vector<2xf32>
    %115 = vector.shape_cast %114 : vector<2xf32> to vector<2x1xf32>
    %cst_35 = arith.constant 1.000000e-16 : f32
    %116 = vector.broadcast %cst_35 : f32 to vector<2x1xf32>
    %117 = arith.addf %115, %116 : vector<2x1xf32>
    %118 = vector.broadcast %117 : vector<2x1xf32> to vector<2x16xf32>
    %119 = arith.divf %113, %118 : vector<2x16xf32>
    %c0_36 = arith.constant 0 : index
    %c0_37 = arith.constant 0 : index
    %120 = vector.load %arg9[%c0_36, %c0_37] : memref<16x16xf32, #tpu.memory_space<vmem>>, vector<2x16xf32>
    tpu.vector_store %arg9[%c0_36, %c0_37], %119 {strides = array<i32>} : memref<16x16xf32, #tpu.memory_space<vmem>>, vector<2x16xf32>,
    %121 = vector.extract_strided_slice %28 {offsets = [2, 0], sizes = [2, 1], strides = [1, 1]} : vector<16x1xf32> to vector<2x1xf32>
    %122 = vector.extract_strided_slice %77 {offsets = [2, 0], sizes = [2, 16], strides = [1, 1]} : vector<16x16xf32> to vector<2x16xf32>
    %123 = vector.broadcast %121 : vector<2x1xf32> to vector<2x16xf32>
    %124 = arith.mulf %123, %122 : vector<2x16xf32>
    %125 = vector.extract_strided_slice %28 {offsets = [2, 0], sizes = [2, 1], strides = [1, 1]} : vector<16x1xf32> to vector<2x1xf32>
    %cst_38 = arith.constant 1.000000e+00 : f32
    %126 = vector.broadcast %cst_38 : f32 to vector<2x1xf32>
    %127 = arith.subf %126, %125 : vector<2x1xf32>
    %128 = vector.broadcast %127 : vector<2x1xf32> to vector<2x16xf32>
    %129 = arith.mulf %128, %119 : vector<2x16xf32>
    %130 = arith.addf %124, %129 : vector<2x16xf32>
    %131 = vector.extract_strided_slice %38 {offsets = [2, 0], sizes = [2, 3], strides = [1, 1]} : vector<16x3xf32> to vector<2x3xf32>
    %132 = vector.extract_strided_slice %130 {offsets = [0, 15], sizes = [2, 1], strides = [1, 1]} : vector<2x16xf32> to vector<2x1xf32>
    %133 = vector.extract_strided_slice %130 {offsets = [0, 0], sizes = [2, 15], strides = [1, 1]} : vector<2x16xf32> to vector<2x15xf32>
    %134 = tpu.concatenate %132, %133 in 1 : vector<2x1xf32>, vector<2x15xf32> -> vector<2x16xf32>
    %135 = vector.extract_strided_slice %130 {offsets = [0, 1], sizes = [2, 15], strides = [1, 1]} : vector<2x16xf32> to vector<2x15xf32>
    %136 = vector.extract_strided_slice %130 {offsets = [0, 0], sizes = [2, 1], strides = [1, 1]} : vector<2x16xf32> to vector<2x1xf32>
    %137 = tpu.concatenate %135, %136 in 1 : vector<2x15xf32>, vector<2x1xf32> -> vector<2x16xf32>
    %138 = vector.extract_strided_slice %131 {offsets = [0, 0], sizes = [2, 1], strides = [1, 1]} : vector<2x3xf32> to vector<2x1xf32>
    %139 = vector.broadcast %138 : vector<2x1xf32> to vector<2x16xf32>
    %140 = arith.mulf %134, %139 : vector<2x16xf32>
    %141 = vector.extract_strided_slice %131 {offsets = [0, 1], sizes = [2, 1], strides = [1, 1]} : vector<2x3xf32> to vector<2x1xf32>
    %142 = vector.broadcast %141 : vector<2x1xf32> to vector<2x16xf32>
    %143 = arith.mulf %130, %142 : vector<2x16xf32>
    %144 = arith.addf %140, %143 : vector<2x16xf32>
    %145 = vector.extract_strided_slice %131 {offsets = [0, 2], sizes = [2, 1], strides = [1, 1]} : vector<2x3xf32> to vector<2x1xf32>
    %146 = vector.broadcast %145 : vector<2x1xf32> to vector<2x16xf32>
    %147 = arith.mulf %137, %146 : vector<2x16xf32>
    %148 = arith.addf %144, %147 : vector<2x16xf32>
    %cst_39 = arith.constant 1.000000e-30 : f32
    %149 = vector.broadcast %cst_39 : f32 to vector<2x16xf32>
    %150 = arith.maximumf %148, %149 : vector<2x16xf32>
    %151 = vector.extract_strided_slice %51 {offsets = [2, 0], sizes = [2, 1], strides = [1, 1]} : vector<16x1xf32> to vector<2x1xf32>
    %152 = math.log %150 : vector<2x16xf32>
    %153 = vector.broadcast %151 : vector<2x1xf32> to vector<2x16xf32>
    %154 = arith.mulf %153, %152 : vector<2x16xf32>
    %155 = math.exp %154 : vector<2x16xf32>
    %cst_40 = arith.constant dense<0.000000e+00> : vector<2xf32>
    %156 = vector.multi_reduction <add>, %155, %cst_40 [1] : vector<2x16xf32> to vector<2xf32>
    %157 = vector.shape_cast %156 : vector<2xf32> to vector<2x1xf32>
    %cst_41 = arith.constant 1.000000e-16 : f32
    %158 = vector.broadcast %cst_41 : f32 to vector<2x1xf32>
    %159 = arith.addf %157, %158 : vector<2x1xf32>
    %160 = vector.broadcast %159 : vector<2x1xf32> to vector<2x16xf32>
    %161 = arith.divf %155, %160 : vector<2x16xf32>
    %c2 = arith.constant 2 : index
    %c0_42 = arith.constant 0 : index
    %162 = vector.load %arg9[%c2, %c0_42] : memref<16x16xf32, #tpu.memory_space<vmem>>, vector<2x16xf32>
    tpu.vector_store %arg9[%c2, %c0_42], %161 {strides = array<i32>} : memref<16x16xf32, #tpu.memory_space<vmem>>, vector<2x16xf32>,
    %163 = vector.extract_strided_slice %28 {offsets = [4, 0], sizes = [2, 1], strides = [1, 1]} : vector<16x1xf32> to vector<2x1xf32>
    %164 = vector.extract_strided_slice %77 {offsets = [4, 0], sizes = [2, 16], strides = [1, 1]} : vector<16x16xf32> to vector<2x16xf32>
    %165 = vector.broadcast %163 : vector<2x1xf32> to vector<2x16xf32>
    %166 = arith.mulf %165, %164 : vector<2x16xf32>
    %167 = vector.extract_strided_slice %28 {offsets = [4, 0], sizes = [2, 1], strides = [1, 1]} : vector<16x1xf32> to vector<2x1xf32>
    %cst_43 = arith.constant 1.000000e+00 : f32
    %168 = vector.broadcast %cst_43 : f32 to vector<2x1xf32>
    %169 = arith.subf %168, %167 : vector<2x1xf32>
    %170 = vector.broadcast %169 : vector<2x1xf32> to vector<2x16xf32>
    %171 = arith.mulf %170, %161 : vector<2x16xf32>
    %172 = arith.addf %166, %171 : vector<2x16xf32>
    %173 = vector.extract_strided_slice %38 {offsets = [4, 0], sizes = [2, 3], strides = [1, 1]} : vector<16x3xf32> to vector<2x3xf32>
    %174 = vector.extract_strided_slice %172 {offsets = [0, 15], sizes = [2, 1], strides = [1, 1]} : vector<2x16xf32> to vector<2x1xf32>
    %175 = vector.extract_strided_slice %172 {offsets = [0, 0], sizes = [2, 15], strides = [1, 1]} : vector<2x16xf32> to vector<2x15xf32>
    %176 = tpu.concatenate %174, %175 in 1 : vector<2x1xf32>, vector<2x15xf32> -> vector<2x16xf32>
    %177 = vector.extract_strided_slice %172 {offsets = [0, 1], sizes = [2, 15], strides = [1, 1]} : vector<2x16xf32> to vector<2x15xf32>
    %178 = vector.extract_strided_slice %172 {offsets = [0, 0], sizes = [2, 1], strides = [1, 1]} : vector<2x16xf32> to vector<2x1xf32>
    %179 = tpu.concatenate %177, %178 in 1 : vector<2x15xf32>, vector<2x1xf32> -> vector<2x16xf32>
    %180 = vector.extract_strided_slice %173 {offsets = [0, 0], sizes = [2, 1], strides = [1, 1]} : vector<2x3xf32> to vector<2x1xf32>
    %181 = vector.broadcast %180 : vector<2x1xf32> to vector<2x16xf32>
    %182 = arith.mulf %176, %181 : vector<2x16xf32>
    %183 = vector.extract_strided_slice %173 {offsets = [0, 1], sizes = [2, 1], strides = [1, 1]} : vector<2x3xf32> to vector<2x1xf32>
    %184 = vector.broadcast %183 : vector<2x1xf32> to vector<2x16xf32>
    %185 = arith.mulf %172, %184 : vector<2x16xf32>
    %186 = arith.addf %182, %185 : vector<2x16xf32>
    %187 = vector.extract_strided_slice %173 {offsets = [0, 2], sizes = [2, 1], strides = [1, 1]} : vector<2x3xf32> to vector<2x1xf32>
    %188 = vector.broadcast %187 : vector<2x1xf32> to vector<2x16xf32>
    %189 = arith.mulf %179, %188 : vector<2x16xf32>
    %190 = arith.addf %186, %189 : vector<2x16xf32>
    %cst_44 = arith.constant 1.000000e-30 : f32
    %191 = vector.broadcast %cst_44 : f32 to vector<2x16xf32>
    %192 = arith.maximumf %190, %191 : vector<2x16xf32>
    %193 = vector.extract_strided_slice %51 {offsets = [4, 0], sizes = [2, 1], strides = [1, 1]} : vector<16x1xf32> to vector<2x1xf32>
    %194 = math.log %192 : vector<2x16xf32>
    %195 = vector.broadcast %193 : vector<2x1xf32> to vector<2x16xf32>
    %196 = arith.mulf %195, %194 : vector<2x16xf32>
    %197 = math.exp %196 : vector<2x16xf32>
    %cst_45 = arith.constant dense<0.000000e+00> : vector<2xf32>
    %198 = vector.multi_reduction <add>, %197, %cst_45 [1] : vector<2x16xf32> to vector<2xf32>
    %199 = vector.shape_cast %198 : vector<2xf32> to vector<2x1xf32>
    %cst_46 = arith.constant 1.000000e-16 : f32
    %200 = vector.broadcast %cst_46 : f32 to vector<2x1xf32>
    %201 = arith.addf %199, %200 : vector<2x1xf32>
    %202 = vector.broadcast %201 : vector<2x1xf32> to vector<2x16xf32>
    %203 = arith.divf %197, %202 : vector<2x16xf32>
    %c4 = arith.constant 4 : index
    %c0_47 = arith.constant 0 : index
    %204 = vector.load %arg9[%c4, %c0_47] : memref<16x16xf32, #tpu.memory_space<vmem>>, vector<2x16xf32>
    tpu.vector_store %arg9[%c4, %c0_47], %203 {strides = array<i32>} : memref<16x16xf32, #tpu.memory_space<vmem>>, vector<2x16xf32>,
    %205 = vector.extract_strided_slice %28 {offsets = [6, 0], sizes = [2, 1], strides = [1, 1]} : vector<16x1xf32> to vector<2x1xf32>
    %206 = vector.extract_strided_slice %77 {offsets = [6, 0], sizes = [2, 16], strides = [1, 1]} : vector<16x16xf32> to vector<2x16xf32>
    %207 = vector.broadcast %205 : vector<2x1xf32> to vector<2x16xf32>
    %208 = arith.mulf %207, %206 : vector<2x16xf32>
    %209 = vector.extract_strided_slice %28 {offsets = [6, 0], sizes = [2, 1], strides = [1, 1]} : vector<16x1xf32> to vector<2x1xf32>
    %cst_48 = arith.constant 1.000000e+00 : f32
    %210 = vector.broadcast %cst_48 : f32 to vector<2x1xf32>
    %211 = arith.subf %210, %209 : vector<2x1xf32>
    %212 = vector.broadcast %211 : vector<2x1xf32> to vector<2x16xf32>
    %213 = arith.mulf %212, %203 : vector<2x16xf32>
    %214 = arith.addf %208, %213 : vector<2x16xf32>
    %215 = vector.extract_strided_slice %38 {offsets = [6, 0], sizes = [2, 3], strides = [1, 1]} : vector<16x3xf32> to vector<2x3xf32>
    %216 = vector.extract_strided_slice %214 {offsets = [0, 15], sizes = [2, 1], strides = [1, 1]} : vector<2x16xf32> to vector<2x1xf32>
    %217 = vector.extract_strided_slice %214 {offsets = [0, 0], sizes = [2, 15], strides = [1, 1]} : vector<2x16xf32> to vector<2x15xf32>
    %218 = tpu.concatenate %216, %217 in 1 : vector<2x1xf32>, vector<2x15xf32> -> vector<2x16xf32>
    %219 = vector.extract_strided_slice %214 {offsets = [0, 1], sizes = [2, 15], strides = [1, 1]} : vector<2x16xf32> to vector<2x15xf32>
    %220 = vector.extract_strided_slice %214 {offsets = [0, 0], sizes = [2, 1], strides = [1, 1]} : vector<2x16xf32> to vector<2x1xf32>
    %221 = tpu.concatenate %219, %220 in 1 : vector<2x15xf32>, vector<2x1xf32> -> vector<2x16xf32>
    %222 = vector.extract_strided_slice %215 {offsets = [0, 0], sizes = [2, 1], strides = [1, 1]} : vector<2x3xf32> to vector<2x1xf32>
    %223 = vector.broadcast %222 : vector<2x1xf32> to vector<2x16xf32>
    %224 = arith.mulf %218, %223 : vector<2x16xf32>
    %225 = vector.extract_strided_slice %215 {offsets = [0, 1], sizes = [2, 1], strides = [1, 1]} : vector<2x3xf32> to vector<2x1xf32>
    %226 = vector.broadcast %225 : vector<2x1xf32> to vector<2x16xf32>
    %227 = arith.mulf %214, %226 : vector<2x16xf32>
    %228 = arith.addf %224, %227 : vector<2x16xf32>
    %229 = vector.extract_strided_slice %215 {offsets = [0, 2], sizes = [2, 1], strides = [1, 1]} : vector<2x3xf32> to vector<2x1xf32>
    %230 = vector.broadcast %229 : vector<2x1xf32> to vector<2x16xf32>
    %231 = arith.mulf %221, %230 : vector<2x16xf32>
    %232 = arith.addf %228, %231 : vector<2x16xf32>
    %cst_49 = arith.constant 1.000000e-30 : f32
    %233 = vector.broadcast %cst_49 : f32 to vector<2x16xf32>
    %234 = arith.maximumf %232, %233 : vector<2x16xf32>
    %235 = vector.extract_strided_slice %51 {offsets = [6, 0], sizes = [2, 1], strides = [1, 1]} : vector<16x1xf32> to vector<2x1xf32>
    %236 = math.log %234 : vector<2x16xf32>
    %237 = vector.broadcast %235 : vector<2x1xf32> to vector<2x16xf32>
    %238 = arith.mulf %237, %236 : vector<2x16xf32>
    %239 = math.exp %238 : vector<2x16xf32>
    %cst_50 = arith.constant dense<0.000000e+00> : vector<2xf32>
    %240 = vector.multi_reduction <add>, %239, %cst_50 [1] : vector<2x16xf32> to vector<2xf32>
    %241 = vector.shape_cast %240 : vector<2xf32> to vector<2x1xf32>
    %cst_51 = arith.constant 1.000000e-16 : f32
    %242 = vector.broadcast %cst_51 : f32 to vector<2x1xf32>
    %243 = arith.addf %241, %242 : vector<2x1xf32>
    %244 = vector.broadcast %243 : vector<2x1xf32> to vector<2x16xf32>
    %245 = arith.divf %239, %244 : vector<2x16xf32>
    %c6 = arith.constant 6 : index
    %c0_52 = arith.constant 0 : index
    %246 = vector.load %arg9[%c6, %c0_52] : memref<16x16xf32, #tpu.memory_space<vmem>>, vector<2x16xf32>
    tpu.vector_store %arg9[%c6, %c0_52], %245 {strides = array<i32>} : memref<16x16xf32, #tpu.memory_space<vmem>>, vector<2x16xf32>,
    %247 = vector.extract_strided_slice %28 {offsets = [8, 0], sizes = [2, 1], strides = [1, 1]} : vector<16x1xf32> to vector<2x1xf32>
    %248 = vector.extract_strided_slice %77 {offsets = [8, 0], sizes = [2, 16], strides = [1, 1]} : vector<16x16xf32> to vector<2x16xf32>
    %249 = vector.broadcast %247 : vector<2x1xf32> to vector<2x16xf32>
    %250 = arith.mulf %249, %248 : vector<2x16xf32>
    %251 = vector.extract_strided_slice %28 {offsets = [8, 0], sizes = [2, 1], strides = [1, 1]} : vector<16x1xf32> to vector<2x1xf32>
    %cst_53 = arith.constant 1.000000e+00 : f32
    %252 = vector.broadcast %cst_53 : f32 to vector<2x1xf32>
    %253 = arith.subf %252, %251 : vector<2x1xf32>
    %254 = vector.broadcast %253 : vector<2x1xf32> to vector<2x16xf32>
    %255 = arith.mulf %254, %245 : vector<2x16xf32>
    %256 = arith.addf %250, %255 : vector<2x16xf32>
    %257 = vector.extract_strided_slice %38 {offsets = [8, 0], sizes = [2, 3], strides = [1, 1]} : vector<16x3xf32> to vector<2x3xf32>
    %258 = vector.extract_strided_slice %256 {offsets = [0, 15], sizes = [2, 1], strides = [1, 1]} : vector<2x16xf32> to vector<2x1xf32>
    %259 = vector.extract_strided_slice %256 {offsets = [0, 0], sizes = [2, 15], strides = [1, 1]} : vector<2x16xf32> to vector<2x15xf32>
    %260 = tpu.concatenate %258, %259 in 1 : vector<2x1xf32>, vector<2x15xf32> -> vector<2x16xf32>
    %261 = vector.extract_strided_slice %256 {offsets = [0, 1], sizes = [2, 15], strides = [1, 1]} : vector<2x16xf32> to vector<2x15xf32>
    %262 = vector.extract_strided_slice %256 {offsets = [0, 0], sizes = [2, 1], strides = [1, 1]} : vector<2x16xf32> to vector<2x1xf32>
    %263 = tpu.concatenate %261, %262 in 1 : vector<2x15xf32>, vector<2x1xf32> -> vector<2x16xf32>
    %264 = vector.extract_strided_slice %257 {offsets = [0, 0], sizes = [2, 1], strides = [1, 1]} : vector<2x3xf32> to vector<2x1xf32>
    %265 = vector.broadcast %264 : vector<2x1xf32> to vector<2x16xf32>
    %266 = arith.mulf %260, %265 : vector<2x16xf32>
    %267 = vector.extract_strided_slice %257 {offsets = [0, 1], sizes = [2, 1], strides = [1, 1]} : vector<2x3xf32> to vector<2x1xf32>
    %268 = vector.broadcast %267 : vector<2x1xf32> to vector<2x16xf32>
    %269 = arith.mulf %256, %268 : vector<2x16xf32>
    %270 = arith.addf %266, %269 : vector<2x16xf32>
    %271 = vector.extract_strided_slice %257 {offsets = [0, 2], sizes = [2, 1], strides = [1, 1]} : vector<2x3xf32> to vector<2x1xf32>
    %272 = vector.broadcast %271 : vector<2x1xf32> to vector<2x16xf32>
    %273 = arith.mulf %263, %272 : vector<2x16xf32>
    %274 = arith.addf %270, %273 : vector<2x16xf32>
    %cst_54 = arith.constant 1.000000e-30 : f32
    %275 = vector.broadcast %cst_54 : f32 to vector<2x16xf32>
    %276 = arith.maximumf %274, %275 : vector<2x16xf32>
    %277 = vector.extract_strided_slice %51 {offsets = [8, 0], sizes = [2, 1], strides = [1, 1]} : vector<16x1xf32> to vector<2x1xf32>
    %278 = math.log %276 : vector<2x16xf32>
    %279 = vector.broadcast %277 : vector<2x1xf32> to vector<2x16xf32>
    %280 = arith.mulf %279, %278 : vector<2x16xf32>
    %281 = math.exp %280 : vector<2x16xf32>
    %cst_55 = arith.constant dense<0.000000e+00> : vector<2xf32>
    %282 = vector.multi_reduction <add>, %281, %cst_55 [1] : vector<2x16xf32> to vector<2xf32>
    %283 = vector.shape_cast %282 : vector<2xf32> to vector<2x1xf32>
    %cst_56 = arith.constant 1.000000e-16 : f32
    %284 = vector.broadcast %cst_56 : f32 to vector<2x1xf32>
    %285 = arith.addf %283, %284 : vector<2x1xf32>
    %286 = vector.broadcast %285 : vector<2x1xf32> to vector<2x16xf32>
    %287 = arith.divf %281, %286 : vector<2x16xf32>
    %c8 = arith.constant 8 : index
    %c0_57 = arith.constant 0 : index
    %288 = vector.load %arg9[%c8, %c0_57] : memref<16x16xf32, #tpu.memory_space<vmem>>, vector<2x16xf32>
    tpu.vector_store %arg9[%c8, %c0_57], %287 {strides = array<i32>} : memref<16x16xf32, #tpu.memory_space<vmem>>, vector<2x16xf32>,
    %289 = vector.extract_strided_slice %28 {offsets = [10, 0], sizes = [2, 1], strides = [1, 1]} : vector<16x1xf32> to vector<2x1xf32>
    %290 = vector.extract_strided_slice %77 {offsets = [10, 0], sizes = [2, 16], strides = [1, 1]} : vector<16x16xf32> to vector<2x16xf32>
    %291 = vector.broadcast %289 : vector<2x1xf32> to vector<2x16xf32>
    %292 = arith.mulf %291, %290 : vector<2x16xf32>
    %293 = vector.extract_strided_slice %28 {offsets = [10, 0], sizes = [2, 1], strides = [1, 1]} : vector<16x1xf32> to vector<2x1xf32>
    %cst_58 = arith.constant 1.000000e+00 : f32
    %294 = vector.broadcast %cst_58 : f32 to vector<2x1xf32>
    %295 = arith.subf %294, %293 : vector<2x1xf32>
    %296 = vector.broadcast %295 : vector<2x1xf32> to vector<2x16xf32>
    %297 = arith.mulf %296, %287 : vector<2x16xf32>
    %298 = arith.addf %292, %297 : vector<2x16xf32>
    %299 = vector.extract_strided_slice %38 {offsets = [10, 0], sizes = [2, 3], strides = [1, 1]} : vector<16x3xf32> to vector<2x3xf32>
    %300 = vector.extract_strided_slice %298 {offsets = [0, 15], sizes = [2, 1], strides = [1, 1]} : vector<2x16xf32> to vector<2x1xf32>
    %301 = vector.extract_strided_slice %298 {offsets = [0, 0], sizes = [2, 15], strides = [1, 1]} : vector<2x16xf32> to vector<2x15xf32>
    %302 = tpu.concatenate %300, %301 in 1 : vector<2x1xf32>, vector<2x15xf32> -> vector<2x16xf32>
    %303 = vector.extract_strided_slice %298 {offsets = [0, 1], sizes = [2, 15], strides = [1, 1]} : vector<2x16xf32> to vector<2x15xf32>
    %304 = vector.extract_strided_slice %298 {offsets = [0, 0], sizes = [2, 1], strides = [1, 1]} : vector<2x16xf32> to vector<2x1xf32>
    %305 = tpu.concatenate %303, %304 in 1 : vector<2x15xf32>, vector<2x1xf32> -> vector<2x16xf32>
    %306 = vector.extract_strided_slice %299 {offsets = [0, 0], sizes = [2, 1], strides = [1, 1]} : vector<2x3xf32> to vector<2x1xf32>
    %307 = vector.broadcast %306 : vector<2x1xf32> to vector<2x16xf32>
    %308 = arith.mulf %302, %307 : vector<2x16xf32>
    %309 = vector.extract_strided_slice %299 {offsets = [0, 1], sizes = [2, 1], strides = [1, 1]} : vector<2x3xf32> to vector<2x1xf32>
    %310 = vector.broadcast %309 : vector<2x1xf32> to vector<2x16xf32>
    %311 = arith.mulf %298, %310 : vector<2x16xf32>
    %312 = arith.addf %308, %311 : vector<2x16xf32>
    %313 = vector.extract_strided_slice %299 {offsets = [0, 2], sizes = [2, 1], strides = [1, 1]} : vector<2x3xf32> to vector<2x1xf32>
    %314 = vector.broadcast %313 : vector<2x1xf32> to vector<2x16xf32>
    %315 = arith.mulf %305, %314 : vector<2x16xf32>
    %316 = arith.addf %312, %315 : vector<2x16xf32>
    %cst_59 = arith.constant 1.000000e-30 : f32
    %317 = vector.broadcast %cst_59 : f32 to vector<2x16xf32>
    %318 = arith.maximumf %316, %317 : vector<2x16xf32>
    %319 = vector.extract_strided_slice %51 {offsets = [10, 0], sizes = [2, 1], strides = [1, 1]} : vector<16x1xf32> to vector<2x1xf32>
    %320 = math.log %318 : vector<2x16xf32>
    %321 = vector.broadcast %319 : vector<2x1xf32> to vector<2x16xf32>
    %322 = arith.mulf %321, %320 : vector<2x16xf32>
    %323 = math.exp %322 : vector<2x16xf32>
    %cst_60 = arith.constant dense<0.000000e+00> : vector<2xf32>
    %324 = vector.multi_reduction <add>, %323, %cst_60 [1] : vector<2x16xf32> to vector<2xf32>
    %325 = vector.shape_cast %324 : vector<2xf32> to vector<2x1xf32>
    %cst_61 = arith.constant 1.000000e-16 : f32
    %326 = vector.broadcast %cst_61 : f32 to vector<2x1xf32>
    %327 = arith.addf %325, %326 : vector<2x1xf32>
    %328 = vector.broadcast %327 : vector<2x1xf32> to vector<2x16xf32>
    %329 = arith.divf %323, %328 : vector<2x16xf32>
    %c10 = arith.constant 10 : index
    %c0_62 = arith.constant 0 : index
    %330 = vector.load %arg9[%c10, %c0_62] : memref<16x16xf32, #tpu.memory_space<vmem>>, vector<2x16xf32>
    tpu.vector_store %arg9[%c10, %c0_62], %329 {strides = array<i32>} : memref<16x16xf32, #tpu.memory_space<vmem>>, vector<2x16xf32>,
    %331 = vector.extract_strided_slice %28 {offsets = [12, 0], sizes = [2, 1], strides = [1, 1]} : vector<16x1xf32> to vector<2x1xf32>
    %332 = vector.extract_strided_slice %77 {offsets = [12, 0], sizes = [2, 16], strides = [1, 1]} : vector<16x16xf32> to vector<2x16xf32>
    %333 = vector.broadcast %331 : vector<2x1xf32> to vector<2x16xf32>
    %334 = arith.mulf %333, %332 : vector<2x16xf32>
    %335 = vector.extract_strided_slice %28 {offsets = [12, 0], sizes = [2, 1], strides = [1, 1]} : vector<16x1xf32> to vector<2x1xf32>
    %cst_63 = arith.constant 1.000000e+00 : f32
    %336 = vector.broadcast %cst_63 : f32 to vector<2x1xf32>
    %337 = arith.subf %336, %335 : vector<2x1xf32>
    %338 = vector.broadcast %337 : vector<2x1xf32> to vector<2x16xf32>
    %339 = arith.mulf %338, %329 : vector<2x16xf32>
    %340 = arith.addf %334, %339 : vector<2x16xf32>
    %341 = vector.extract_strided_slice %38 {offsets = [12, 0], sizes = [2, 3], strides = [1, 1]} : vector<16x3xf32> to vector<2x3xf32>
    %342 = vector.extract_strided_slice %340 {offsets = [0, 15], sizes = [2, 1], strides = [1, 1]} : vector<2x16xf32> to vector<2x1xf32>
    %343 = vector.extract_strided_slice %340 {offsets = [0, 0], sizes = [2, 15], strides = [1, 1]} : vector<2x16xf32> to vector<2x15xf32>
    %344 = tpu.concatenate %342, %343 in 1 : vector<2x1xf32>, vector<2x15xf32> -> vector<2x16xf32>
    %345 = vector.extract_strided_slice %340 {offsets = [0, 1], sizes = [2, 15], strides = [1, 1]} : vector<2x16xf32> to vector<2x15xf32>
    %346 = vector.extract_strided_slice %340 {offsets = [0, 0], sizes = [2, 1], strides = [1, 1]} : vector<2x16xf32> to vector<2x1xf32>
    %347 = tpu.concatenate %345, %346 in 1 : vector<2x15xf32>, vector<2x1xf32> -> vector<2x16xf32>
    %348 = vector.extract_strided_slice %341 {offsets = [0, 0], sizes = [2, 1], strides = [1, 1]} : vector<2x3xf32> to vector<2x1xf32>
    %349 = vector.broadcast %348 : vector<2x1xf32> to vector<2x16xf32>
    %350 = arith.mulf %344, %349 : vector<2x16xf32>
    %351 = vector.extract_strided_slice %341 {offsets = [0, 1], sizes = [2, 1], strides = [1, 1]} : vector<2x3xf32> to vector<2x1xf32>
    %352 = vector.broadcast %351 : vector<2x1xf32> to vector<2x16xf32>
    %353 = arith.mulf %340, %352 : vector<2x16xf32>
    %354 = arith.addf %350, %353 : vector<2x16xf32>
    %355 = vector.extract_strided_slice %341 {offsets = [0, 2], sizes = [2, 1], strides = [1, 1]} : vector<2x3xf32> to vector<2x1xf32>
    %356 = vector.broadcast %355 : vector<2x1xf32> to vector<2x16xf32>
    %357 = arith.mulf %347, %356 : vector<2x16xf32>
    %358 = arith.addf %354, %357 : vector<2x16xf32>
    %cst_64 = arith.constant 1.000000e-30 : f32
    %359 = vector.broadcast %cst_64 : f32 to vector<2x16xf32>
    %360 = arith.maximumf %358, %359 : vector<2x16xf32>
    %361 = vector.extract_strided_slice %51 {offsets = [12, 0], sizes = [2, 1], strides = [1, 1]} : vector<16x1xf32> to vector<2x1xf32>
    %362 = math.log %360 : vector<2x16xf32>
    %363 = vector.broadcast %361 : vector<2x1xf32> to vector<2x16xf32>
    %364 = arith.mulf %363, %362 : vector<2x16xf32>
    %365 = math.exp %364 : vector<2x16xf32>
    %cst_65 = arith.constant dense<0.000000e+00> : vector<2xf32>
    %366 = vector.multi_reduction <add>, %365, %cst_65 [1] : vector<2x16xf32> to vector<2xf32>
    %367 = vector.shape_cast %366 : vector<2xf32> to vector<2x1xf32>
    %cst_66 = arith.constant 1.000000e-16 : f32
    %368 = vector.broadcast %cst_66 : f32 to vector<2x1xf32>
    %369 = arith.addf %367, %368 : vector<2x1xf32>
    %370 = vector.broadcast %369 : vector<2x1xf32> to vector<2x16xf32>
    %371 = arith.divf %365, %370 : vector<2x16xf32>
    %c12 = arith.constant 12 : index
    %c0_67 = arith.constant 0 : index
    %372 = vector.load %arg9[%c12, %c0_67] : memref<16x16xf32, #tpu.memory_space<vmem>>, vector<2x16xf32>
    tpu.vector_store %arg9[%c12, %c0_67], %371 {strides = array<i32>} : memref<16x16xf32, #tpu.memory_space<vmem>>, vector<2x16xf32>,
    %373 = vector.extract_strided_slice %28 {offsets = [14, 0], sizes = [2, 1], strides = [1, 1]} : vector<16x1xf32> to vector<2x1xf32>
    %374 = vector.extract_strided_slice %77 {offsets = [14, 0], sizes = [2, 16], strides = [1, 1]} : vector<16x16xf32> to vector<2x16xf32>
    %375 = vector.broadcast %373 : vector<2x1xf32> to vector<2x16xf32>
    %376 = arith.mulf %375, %374 : vector<2x16xf32>
    %377 = vector.extract_strided_slice %28 {offsets = [14, 0], sizes = [2, 1], strides = [1, 1]} : vector<16x1xf32> to vector<2x1xf32>
    %cst_68 = arith.constant 1.000000e+00 : f32
    %378 = vector.broadcast %cst_68 : f32 to vector<2x1xf32>
    %379 = arith.subf %378, %377 : vector<2x1xf32>
    %380 = vector.broadcast %379 : vector<2x1xf32> to vector<2x16xf32>
    %381 = arith.mulf %380, %371 : vector<2x16xf32>
    %382 = arith.addf %376, %381 : vector<2x16xf32>
    %383 = vector.extract_strided_slice %38 {offsets = [14, 0], sizes = [2, 3], strides = [1, 1]} : vector<16x3xf32> to vector<2x3xf32>
    %384 = vector.extract_strided_slice %382 {offsets = [0, 15], sizes = [2, 1], strides = [1, 1]} : vector<2x16xf32> to vector<2x1xf32>
    %385 = vector.extract_strided_slice %382 {offsets = [0, 0], sizes = [2, 15], strides = [1, 1]} : vector<2x16xf32> to vector<2x15xf32>
    %386 = tpu.concatenate %384, %385 in 1 : vector<2x1xf32>, vector<2x15xf32> -> vector<2x16xf32>
    %387 = vector.extract_strided_slice %382 {offsets = [0, 1], sizes = [2, 15], strides = [1, 1]} : vector<2x16xf32> to vector<2x15xf32>
    %388 = vector.extract_strided_slice %382 {offsets = [0, 0], sizes = [2, 1], strides = [1, 1]} : vector<2x16xf32> to vector<2x1xf32>
    %389 = tpu.concatenate %387, %388 in 1 : vector<2x15xf32>, vector<2x1xf32> -> vector<2x16xf32>
    %390 = vector.extract_strided_slice %383 {offsets = [0, 0], sizes = [2, 1], strides = [1, 1]} : vector<2x3xf32> to vector<2x1xf32>
    %391 = vector.broadcast %390 : vector<2x1xf32> to vector<2x16xf32>
    %392 = arith.mulf %386, %391 : vector<2x16xf32>
    %393 = vector.extract_strided_slice %383 {offsets = [0, 1], sizes = [2, 1], strides = [1, 1]} : vector<2x3xf32> to vector<2x1xf32>
    %394 = vector.broadcast %393 : vector<2x1xf32> to vector<2x16xf32>
    %395 = arith.mulf %382, %394 : vector<2x16xf32>
    %396 = arith.addf %392, %395 : vector<2x16xf32>
    %397 = vector.extract_strided_slice %383 {offsets = [0, 2], sizes = [2, 1], strides = [1, 1]} : vector<2x3xf32> to vector<2x1xf32>
    %398 = vector.broadcast %397 : vector<2x1xf32> to vector<2x16xf32>
    %399 = arith.mulf %389, %398 : vector<2x16xf32>
    %400 = arith.addf %396, %399 : vector<2x16xf32>
    %cst_69 = arith.constant 1.000000e-30 : f32
    %401 = vector.broadcast %cst_69 : f32 to vector<2x16xf32>
    %402 = arith.maximumf %400, %401 : vector<2x16xf32>
    %403 = vector.extract_strided_slice %51 {offsets = [14, 0], sizes = [2, 1], strides = [1, 1]} : vector<16x1xf32> to vector<2x1xf32>
    %404 = math.log %402 : vector<2x16xf32>
    %405 = vector.broadcast %403 : vector<2x1xf32> to vector<2x16xf32>
    %406 = arith.mulf %405, %404 : vector<2x16xf32>
    %407 = math.exp %406 : vector<2x16xf32>
    %cst_70 = arith.constant dense<0.000000e+00> : vector<2xf32>
    %408 = vector.multi_reduction <add>, %407, %cst_70 [1] : vector<2x16xf32> to vector<2xf32>
    %409 = vector.shape_cast %408 : vector<2xf32> to vector<2x1xf32>
    %cst_71 = arith.constant 1.000000e-16 : f32
    %410 = vector.broadcast %cst_71 : f32 to vector<2x1xf32>
    %411 = arith.addf %409, %410 : vector<2x1xf32>
    %412 = vector.broadcast %411 : vector<2x1xf32> to vector<2x16xf32>
    %413 = arith.divf %407, %412 : vector<2x16xf32>
    %c14 = arith.constant 14 : index
    %c0_72 = arith.constant 0 : index
    %414 = vector.load %arg9[%c14, %c0_72] : memref<16x16xf32, #tpu.memory_space<vmem>>, vector<2x16xf32>
    tpu.vector_store %arg9[%c14, %c0_72], %413 {strides = array<i32>} : memref<16x16xf32, #tpu.memory_space<vmem>>, vector<2x16xf32>,
    %c0_73 = arith.constant 0 : index
    %c0_74 = arith.constant 0 : index
    %415 = vector.load %arg9[%c0_73, %c0_74] : memref<16x16xf32, #tpu.memory_space<vmem>>, vector<16x16xf32>
    %cst_75 = arith.constant dense<0.000000e+00> : vector<16x32xf32>
    %416 = tpu.matmul %415, %4, %cst_75 {dimension_numbers = #tpu.dot_dimension_numbers<[1], [0], [0], [1], [0, 0, 1, 1], [], []>} : vector<16x16xf32>, vector<16x32xf32>, vector<16x32xf32> -> vector<16x32xf32>
    %cst_76 = arith.constant 0.000000e+00 : f32
    %417 = vector.broadcast %cst_76 : f32 to vector<16x80xf32>
    %418 = tpu.concatenate %416, %415, %417 in 1 : vector<16x32xf32>, vector<16x16xf32>, vector<16x80xf32> -> vector<16x128xf32>
    %c0_77 = arith.constant 0 : index
    %c0_78 = arith.constant 0 : index
    %419 = vector.load %arg8[%c0_77, %c0_78] : memref<16x128xf32, #tpu.memory_space<vmem>>, vector<16x128xf32>
    tpu.vector_store %arg8[%c0_77, %c0_78], %418 {strides = array<i32>} : memref<16x128xf32, #tpu.memory_space<vmem>>, vector<16x128xf32>,
    return
  }
  func.func @transform_0(%arg0: i32) -> (i32, i32) {
    %c0_i32 = arith.constant 0 : i32
    %c0_i32_0 = arith.constant 0 : i32
    %c0_i32_1 = arith.constant 0 : i32
    return %c0_i32, %c0_i32_0 : i32, i32
  }
  func.func @transform_1(%arg0: i32) -> (i32, i32) {
    %c0_i32 = arith.constant 0 : i32
    %c0_i32_0 = arith.constant 0 : i32
    %c0_i32_1 = arith.constant 0 : i32
    return %c0_i32, %c0_i32_0 : i32, i32
  }
  func.func @transform_2(%arg0: i32) -> (i32, i32) {
    %c0_i32 = arith.constant 0 : i32
    %c0_i32_0 = arith.constant 0 : i32
    %c0_i32_1 = arith.constant 0 : i32
    return %c0_i32, %c0_i32_0 : i32, i32
  }
  func.func @transform_3(%arg0: i32) -> (i32, i32) {
    %c0_i32 = arith.constant 0 : i32
    %c0_i32_0 = arith.constant 0 : i32
    %c0_i32_1 = arith.constant 0 : i32
    return %c0_i32, %c0_i32_0 : i32, i32
  }
  func.func @transform_4(%arg0: i32) -> (i32, i32) {
    %c0_i32 = arith.constant 0 : i32
    %c0_i32_0 = arith.constant 0 : i32
    %c0_i32_1 = arith.constant 0 : i32
    return %c0_i32, %c0_i32_0 : i32, i32
  }
  func.func @transform_5(%arg0: i32) -> (i32, i32) {
    %c0_i32 = arith.constant 0 : i32
    %c0_i32_0 = arith.constant 0 : i32
    %c0_i32_1 = arith.constant 0 : i32
    return %c0_i32, %c0_i32_0 : i32, i32
  }
  func.func @transform_6(%arg0: i32) -> (i32, i32) {
    %c0_i32 = arith.constant 0 : i32
    %c0_i32_0 = arith.constant 0 : i32
    %c0_i32_1 = arith.constant 0 : i32
    return %c0_i32, %c0_i32_0 : i32, i32
  }
  func.func @transform_7(%arg0: i32) -> (i32, i32) {
    %c0_i32 = arith.constant 0 : i32
    %c0_i32_0 = arith.constant 0 : i32
    %c0_i32_1 = arith.constant 0 : i32
    return %c0_i32, %c0_i32_0 : i32, i32
  }
}

</mosaic_0001>

<llo_original>
// kernel: ntm_read_head_seq.1
$region0: #{ntm_read_head_seq.1}
  #allocation0 [shape = 'u32[]', space=smem, size = 0x4, offset = 0x4, fixed_abs, tag = 'smem constant byte address 0x4 - core index']
  #allocation1 [shape = 'u32[144,128]{1,0:T(1,128)}', space=vmem, size = 0x12000, scoped, tag = 'internal scratch']
  #allocation2 [shape = 'f32[16,16]{1,0:T(8,128)}', space=vmem, size = 0x2000, scoped, tag = 'scratch operand']
  %s0 = inlined_call_operand.vmem [shape: f32[16,32], index: 0, kind: input, shape index: {}]
  %s1 = inlined_call_operand.vmem [shape: f32[32,38], index: 1, kind: input, shape index: {}]
  %s2 = inlined_call_operand.vmem [shape: f32[1,38], index: 2, kind: input, shape index: {}]
  %s3 = inlined_call_operand.vmem [shape: f32[32,16], index: 3, kind: input, shape index: {}]
  %s4 = inlined_call_operand.vmem [shape: f32[16,32], index: 4, kind: input, shape index: {}]
  %s5 = inlined_call_operand.vmem [shape: f32[1,16], index: 5, kind: input, shape index: {}]
  %s6 = inlined_call_operand.vmem [shape: f32[2,16], index: 6, kind: input, shape index: {}]
  %s7 = inlined_call_operand.vmem [shape: f32[16,128], index: 7, kind: output, shape index: {}]
  %s8 = sld [smem:[#allocation0]]
  $region38: #{ntm_read_head_seq.1} parent=0
    _
  %s10 = ssub.s32 1, %s8
  %s11 = scalar_select 0, %s10, %s8
  // Predicated region
  $region2: #{ntm_read_head_seq.1} parent=0 // pred_check
    _
  $region3: #{ntm_read_head_seq.1} parent=0 // pred_check_branch
    %13 = sbr.rel (0) target = $region5
  $region4: #{ntm_read_head_seq.1} parent=0 // pred_region
    _
  $region5: #{ntm_read_head_seq.1} parent=0 // pred_fallthru
    _
  // Predicated region
  $region6: #{ntm_read_head_seq.1} parent=0 // pred_check
    _
  $region7: #{ntm_read_head_seq.1} parent=0 // pred_check_branch
    %15 = sbr.rel (0) target = $region9
  $region8: #{ntm_read_head_seq.1} parent=0 // pred_region
    _
  $region9: #{ntm_read_head_seq.1} parent=0 // pred_fallthru
    _
  // Predicated region
  $region10: #{ntm_read_head_seq.1} parent=0 // pred_check
    _
  $region11: #{ntm_read_head_seq.1} parent=0 // pred_check_branch
    %17 = sbr.rel (0) target = $region13
  $region12: #{ntm_read_head_seq.1} parent=0 // pred_region
    _
  $region13: #{ntm_read_head_seq.1} parent=0 // pred_fallthru
    _
  // Predicated region
  $region14: #{ntm_read_head_seq.1} parent=0 // pred_check
    _
  $region15: #{ntm_read_head_seq.1} parent=0 // pred_check_branch
    %19 = sbr.rel (0) target = $region17
  $region16: #{ntm_read_head_seq.1} parent=0 // pred_region
    _
  $region17: #{ntm_read_head_seq.1} parent=0 // pred_fallthru
    _
  // Predicated region
  $region18: #{ntm_read_head_seq.1} parent=0 // pred_check
    _
  $region19: #{ntm_read_head_seq.1} parent=0 // pred_check_branch
    %21 = sbr.rel (0) target = $region21
  $region20: #{ntm_read_head_seq.1} parent=0 // pred_region
    _
  $region21: #{ntm_read_head_seq.1} parent=0 // pred_fallthru
    _
  // Predicated region
  $region22: #{ntm_read_head_seq.1} parent=0 // pred_check
    _
  $region23: #{ntm_read_head_seq.1} parent=0 // pred_check_branch
    %23 = sbr.rel (0) target = $region25
  $region24: #{ntm_read_head_seq.1} parent=0 // pred_region
    _
  $region25: #{ntm_read_head_seq.1} parent=0 // pred_fallthru
    _
  // Predicated region
  $region26: #{ntm_read_head_seq.1} parent=0 // pred_check
    _
  $region27: #{ntm_read_head_seq.1} parent=0 // pred_check_branch
    %25 = sbr.rel (0) target = $region29
  $region28: #{ntm_read_head_seq.1} parent=0 // pred_region
    _
  $region29: #{ntm_read_head_seq.1} parent=0 // pred_fallthru
    _
  %v26 = vld [vmem:[%s0] sm:$0xff]
  %v27 = vld [vmem:[%s0 + $0x8] sm:$0xff]
  %v28 = vld [vmem:[%s1] sm:$0xff]
  %v29 = vld [vmem:[%s1 + $0x8] sm:$0xff]
  %v30 = vld [vmem:[%s1 + $0x10] sm:$0xff]
  %v31 = vld [vmem:[%s1 + $0x18] sm:$0xff]
  %v32 = vld [vmem:[%s2] sm:$0x1]
  %v33 = vld [vmem:[%s3] sm:$0xff]
  %v34 = vld [vmem:[%s3 + $0x8] sm:$0xff]
  %v35 = vld [vmem:[%s3 + $0x10] sm:$0xff]
  %v36 = vld [vmem:[%s3 + $0x18] sm:$0xff]
  %v37 = vld [vmem:[%s4] sm:$0xff]
  %v38 = vld [vmem:[%s4 + $0x8] sm:$0xff]
  %v39 = vld [vmem:[%s5] sm:$0x1]
  %v41 = vlaneseq
  %v42 = vshrl.u32 %v41, 7
  %v43 = vsub.s32 0, %v42
  %v44 = vrot.slane %v32, %v43
  %vm46 = vcmask 261120
  %v48 = vsel %vm46, %v26, 0
  %v51 = vsel %vm46, %v27, 0
  %53 = vmatprep.subr.mxu0 0.0
  %54 = vmatpush1.msra.mxu0 %v28
  %55 = vmatprep.subr.mxu0 0.0
  %56 = vmatpush1.msra.mxu0 %v29
  %57 = vmatprep.subr.mxu0 0.0
  %58 = vmatpush1.msra.mxu0 %v30
  %59 = vmatprep.subr.mxu0 0.0
  %60 = vmatpush1.msra.mxu0 %v31
  %61 = vmatprep.subr.mxu0 0.0
  %62 = vmatpush1.msra.mxu0 0.0
  %63 = vmatprep.subr.mxu0 0.0
  %64 = vmatpush1.msra.mxu0 0.0
  %65 = vmatprep.subr.mxu0 0.0
  %66 = vmatpush1.msra.mxu0 0.0
  %67 = vmatprep.subr.mxu0 0.0
  %68 = vmatpush1.msra.mxu0 0.0
  %69 = vmatprep.subr.mxu0 0.0
  %70 = vmatpush1.msra.mxu0 0.0
  %71 = vmatprep.subr.mxu0 0.0
  %72 = vmatpush1.msra.mxu0 0.0
  %73 = vmatprep.subr.mxu0 0.0
  %74 = vmatpush1.msra.mxu0 0.0
  %75 = vmatprep.subr.mxu0 0.0
  %76 = vmatpush1.msra.mxu0 0.0
  %77 = vmatprep.subr.mxu0 0.0
  %78 = vmatpush1.msra.mxu0 0.0
  %79 = vmatprep.subr.mxu0 0.0
  %80 = vmatpush1.msra.mxu0 0.0
  %81 = vmatprep.subr.mxu0 0.0
  %82 = vmatpush1.msra.mxu0 0.0
  %83 = vmatprep.subr.mxu0 0.0
  %84 = vmatpush1.msra.mxu0 0.0
  %85 = vmatprep.subr.mxu0 0.0
  %86 = vmatpush1.msra.mxu0 0.0
  %87 = vmatprep.subr.mxu0 0.0
  %88 = vmatpush1.msra.mxu0 0.0
  %89 = vmatprep.subr.mxu0 0.0
  %90 = vmatpush1.msra.mxu0 0.0
  %91 = vmatprep.subr.mxu0 0.0
  %92 = vmatpush1.msra.mxu0 0.0
  %93 = vmatprep.subr.mxu0 0.0
  %94 = vmatpush1.msra.mxu0 0.0
  %95 = vmatprep.subr.mxu0 0.0
  %96 = vmatpush1.msra.mxu0 0.0
  %97 = vmatprep.subr.mxu0 0.0
  %98 = vmatpush1.msra.mxu0 0.0
  %99 = vmatprep.subr.mxu0 0.0
  %100 = vmatpush1.msra.mxu0 0.0
  %101 = vmatprep.subr.mxu0 0.0
  %102 = vmatpush1.msra.mxu0 0.0
  %103 = vmatprep.subr.mxu0 0.0
  %104 = vmatpush1.msra.mxu0 0.0
  %105 = vmatprep.subr.mxu0 0.0
  %106 = vmatpush1.msra.mxu0 0.0
  %107 = vmatprep.subr.mxu0 0.0
  %108 = vmatpush1.msra.mxu0 0.0
  %109 = vmatprep.subr.mxu0 0.0
  %110 = vmatpush1.msra.mxu0 0.0
  %111 = vmatprep.subr.mxu0 0.0
  %112 = vmatpush1.msra.mxu0 0.0
  %113 = vmatprep.subr.mxu0 0.0
  %114 = vmatpush1.msra.mxu0 0.0
  %115 = vmatprep.subr.mxu0 0.0
  %116 = vmatpush1.msra.mxu0 0.0
  %117 = vmatprep.mubr.f32.mxu0 0.0
  %118 = vmatmul.mubr.f32.gmra.mrb[0].mxu0 %v48
  %v119 = vpop.f32.mrb[0].mxu0
  %v120 = vadd.f32 %v44, %v119
  %v121 = vpop.f32.mrb[0].mxu0
  %122 = vmatprep.mubr.f32.mxu0 0.0
  %123 = vmatmul.mubr.f32.gmra.mrb[0].mxu0 %v51
  %v124 = vpop.f32.mrb[0].mxu0
  %v125 = vadd.f32 %v44, %v124
  %v126 = vpop.f32.mrb[0].mxu0
  %127 = vdwg.mxu0
  %v128 = vmax.f32 %v120, 0.0
  %v129 = vmax.f32 %v125, 0.0
  %v130 = vand.u32 2147483647, %v120
  %v131 = vand.u32 2147483647, %v125
  %v132 = vsub.f32 0.0, %v130
  %v133 = vsub.f32 0.0, %v131
  %v134 = vmul.f32 %v132, 1.442695
  %v135 = vpow.pop %v134
  %v136 = vmul.f32 %v133, 1.442695
  %v137 = vpow.pop %v136
  %v138 = vadd.f32 %v135, 1.0
  %v139 = vadd.f32 %v137, 1.0
  %v140 = vlog2.pop %v138
  %v141 = vmul.f32 %v140, 0.6931472
  %v142 = vlog2.pop %v139
  %v143 = vmul.f32 %v142, 0.6931472
  %v144 = vadd.f32 %v128, %v141
  %v145 = vadd.f32 %v129, %v143
  %v146 = vsub.f32 0.0, %v120
  %v147 = vsub.f32 0.0, %v125
  %v148 = vmul.f32 %v146, 1.442695
  %v149 = vpow.pop %v148
  %v150 = vmul.f32 %v147, 1.442695
  %v151 = vpow.pop %v150
  %v152 = vadd.f32 %v149, 1.0
  %v153 = vadd.f32 %v151, 1.0
  %v154 = vrcp.pop %v152
  %v155 = vmul.f32 1.0, %v154
  %v156 = vrcp.pop %v153
  %v157 = vmul.f32 1.0, %v156
  %vm158 = vcmask 302352
  %v159 = vsel %vm158, %v120, -inf
  %160 = vmax.xlane.f32.xlu0 %v159
  %v161 = vpop.xlane.xlu0 %160
  %v162 = vsel %vm158, %v125, -inf
  %163 = vmax.xlane.f32.xlu0 %v162
  %v164 = vpop.xlane.xlu0 %163
  %v165 = vsub.f32 %v120, %v161
  %v166 = vsub.f32 %v125, %v164
  %v167 = vmul.f32 %v165, 1.442695
  %v168 = vpow.pop %v167
  %v169 = vmul.f32 %v166, 1.442695
  %v170 = vpow.pop %v169
  %173 = vrot.lane.b32.xlu0 %v168, 94
  %v174 = vpop.permute.xlu0 %173
  %175 = vrot.lane.b32.xlu0 %v170, 94
  %v176 = vpop.permute.xlu0 %175
  %vm179 = vcmask 23552
  %v180 = vsel %vm179, %v174, 0.0
  %181 = vadd.xlane.f32.xlu0 %v180
  %v182 = vpop.xlane.xlu0 %181
  %v183 = vsel %vm179, %v176, 0.0
  %184 = vadd.xlane.f32.xlu0 %v183
  %v185 = vpop.xlane.xlu0 %184
  %v186 = vrcp.pop %v182
  %v187 = vmul.f32 %v168, %v186
  %v188 = vrcp.pop %v185
  %v189 = vmul.f32 %v170, %v188
  %v190 = vadd.f32 %v144, 1.0
  %v191 = vadd.f32 %v145, 1.0
  %v192 = vadd.f32 %v120, 1e-16
  %v193 = vadd.f32 %v125, 1e-16
  %v195 = vsel %vm46, %v192, 0
  %v198 = vsel %vm46, %v193, 0
  %200 = vmatprep.subr.mxu0 0.0
  %201 = vmatpush1.msra.mxu0 %v33
  %202 = vmatprep.subr.mxu0 0.0
  %203 = vmatpush1.msra.mxu0 %v34
  %204 = vmatprep.subr.mxu0 0.0
  %205 = vmatpush1.msra.mxu0 %v35
  %206 = vmatprep.subr.mxu0 0.0
  %207 = vmatpush1.msra.mxu0 %v36
  %208 = vmatprep.subr.mxu0 0.0
  %209 = vmatpush1.msra.mxu0 0.0
  %210 = vmatprep.subr.mxu0 0.0
  %211 = vmatpush1.msra.mxu0 0.0
  %212 = vmatprep.subr.mxu0 0.0
  %213 = vmatpush1.msra.mxu0 0.0
  %214 = vmatprep.subr.mxu0 0.0
  %215 = vmatpush1.msra.mxu0 0.0
  %216 = vmatprep.subr.mxu0 0.0
  %217 = vmatpush1.msra.mxu0 0.0
  %218 = vmatprep.subr.mxu0 0.0
  %219 = vmatpush1.msra.mxu0 0.0
  %220 = vmatprep.subr.mxu0 0.0
  %221 = vmatpush1.msra.mxu0 0.0
  %222 = vmatprep.subr.mxu0 0.0
  %223 = vmatpush1.msra.mxu0 0.0
  %224 = vmatprep.subr.mxu0 0.0
  %225 = vmatpush1.msra.mxu0 0.0
  %226 = vmatprep.subr.mxu0 0.0
  %227 = vmatpush1.msra.mxu0 0.0
  %228 = vmatprep.subr.mxu0 0.0
  %229 = vmatpush1.msra.mxu0 0.0
  %230 = vmatprep.subr.mxu0 0.0
  %231 = vmatpush1.msra.mxu0 0.0
  %232 = vmatprep.subr.mxu0 0.0
  %233 = vmatpush1.msra.mxu0 0.0
  %234 = vmatprep.subr.mxu0 0.0
  %235 = vmatpush1.msra.mxu0 0.0
  %236 = vmatprep.subr.mxu0 0.0
  %237 = vmatpush1.msra.mxu0 0.0
  %238 = vmatprep.subr.mxu0 0.0
  %239 = vmatpush1.msra.mxu0 0.0
  %240 = vmatprep.subr.mxu0 0.0
  %241 = vmatpush1.msra.mxu0 0.0
  %242 = vmatprep.subr.mxu0 0.0
  %243 = vmatpush1.msra.mxu0 0.0
  %244 = vmatprep.subr.mxu0 0.0
  %245 = vmatpush1.msra.mxu0 0.0
  %246 = vmatprep.subr.mxu0 0.0
  %247 = vmatpush1.msra.mxu0 0.0
  %248 = vmatprep.subr.mxu0 0.0
  %249 = vmatpush1.msra.mxu0 0.0
  %250 = vmatprep.subr.mxu0 0.0
  %251 = vmatpush1.msra.mxu0 0.0
  %252 = vmatprep.subr.mxu0 0.0
  %253 = vmatpush1.msra.mxu0 0.0
  %254 = vmatprep.subr.mxu0 0.0
  %255 = vmatpush1.msra.mxu0 0.0
  %256 = vmatprep.subr.mxu0 0.0
  %257 = vmatpush1.msra.mxu0 0.0
  %258 = vmatprep.subr.mxu0 0.0
  %259 = vmatpush1.msra.mxu0 0.0
  %260 = vmatprep.subr.mxu0 0.0
  %261 = vmatpush1.msra.mxu0 0.0
  %262 = vmatprep.subr.mxu0 0.0
  %263 = vmatpush1.msra.mxu0 0.0
  %264 = vmatprep.mubr.f32.mxu0 0.0
  %265 = vmatmul.mubr.f32.gmra.mrb[0].mxu0 %v195
  %v266 = vpop.f32.mrb[0].mxu0
  %v267 = vadd.f32 0.0, %v266
  %v268 = vpop.f32.mrb[0].mxu0
  %269 = vmatprep.mubr.f32.mxu0 0.0
  %270 = vmatmul.mubr.f32.gmra.mrb[0].mxu0 %v198
  %v271 = vpop.f32.mrb[0].mxu0
  %v272 = vadd.f32 0.0, %v271
  %v273 = vpop.f32.mrb[0].mxu0
  %274 = vdwg.mxu0
  %v275 = vmul.f32 %v192, %v192
  %v276 = vmul.f32 %v193, %v193
  %v277 = vsel %vm46, %v275, 0.0
  %278 = vadd.xlane.f32.xlu0 %v277
  %v279 = vpop.xlane.xlu0 %278
  %v280 = vsel %vm46, %v276, 0.0
  %281 = vadd.xlane.f32.xlu0 %v280
  %v282 = vpop.xlane.xlu0 %281
  %v283 = vrsqrt.pop %v279
  %v284 = vmul.f32 %v279, %v283
  %vm285 = vcmp.eq.f32.partialorder %v279, inf
  %v286 = vsel %vm285, %v279, %v284
  %vm287 = vcmp.eq.f32.partialorder %v279, 0.0
  %v288 = vand.u32 %v279, 2147483648
  %v289 = vsel %vm287, %v288, %v286
  %v290 = vrsqrt.pop %v282
  %v291 = vmul.f32 %v282, %v290
  %vm292 = vcmp.eq.f32.partialorder %v282, inf
  %v293 = vsel %vm292, %v282, %v291
  %vm294 = vcmp.eq.f32.partialorder %v282, 0.0
  %v295 = vand.u32 %v282, 2147483648
  %v296 = vsel %vm294, %v295, %v293
  %v297 = vmax.f32 %v289, 1e-08
  %v298 = vmax.f32 %v296, 1e-08
  %v299 = vrcp.pop %v297
  %v300 = vmul.f32 1.0, %v299
  %v301 = vrcp.pop %v298
  %v302 = vmul.f32 1.0, %v301
  %v303 = vmul.f32 %v267, %v300
  %v304 = vmul.f32 %v272, %v302
  %v306 = vlaneseq
  %v307 = vshrl.u32 %v306, 7
  %v308 = vsub.s32 0, %v307
  %v309 = vrot.slane %v39, %v308
  %v311 = vmul.f32 %v303, %v309
  %v312 = vmul.f32 %v304, %v309
  %314 = vset.pattern.permute.xlu0 32
  %315 = vperm.xlu0 %314, %v144
  %v316 = vpop.permute.xlu0 %315
  %319 = vset.pattern.permute.xlu0 32
  %320 = vperm.xlu0 %319, %v145
  %v321 = vpop.permute.xlu0 %320
  %v323 = vmul.f32 %v316, %v311
  %v324 = vmul.f32 %v321, %v312
  %vm325 = vcmask 130048
  %v326 = vsel %vm325, %v323, -inf
  %327 = vmax.xlane.f32.xlu0 %v326
  %v328 = vpop.xlane.xlu0 %327
  %v329 = vsel %vm325, %v324, -inf
  %330 = vmax.xlane.f32.xlu0 %v329
  %v331 = vpop.xlane.xlu0 %330
  %v332 = vsub.f32 %v323, %v328
  %v333 = vsub.f32 %v324, %v331
  %v334 = vmul.f32 %v332, 1.442695
  %v335 = vpow.pop %v334
  %v336 = vmul.f32 %v333, 1.442695
  %v337 = vpow.pop %v336
  %v338 = vsel %vm325, %v335, 0.0
  %339 = vadd.xlane.f32.xlu0 %v338
  %v340 = vpop.xlane.xlu0 %339
  %v341 = vsel %vm325, %v337, 0.0
  %342 = vadd.xlane.f32.xlu0 %v341
  %v343 = vpop.xlane.xlu0 %342
  %v344 = vrcp.pop %v340
  %v345 = vmul.f32 %v335, %v344
  %v346 = vrcp.pop %v343
  %v347 = vmul.f32 %v337, %v346
  %v348 = vld [vmem:[%s6] sm:$0x3]
  %350 = vset.pattern.permute.xlu0 33
  %351 = vperm.xlu0 %350, %v155
  %v352 = vpop.permute.xlu0 %351
  %v354 = vmul.f32 %v352, %v345
  %v355 = vsub.f32 1.0, %v155
  %357 = vset.pattern.permute.xlu0 33
  %358 = vperm.xlu0 %357, %v355
  %v359 = vpop.permute.xlu0 %358
  %v361 = vmul.f32 %v359, %v348
  %v362 = vadd.f32 %v354, %v361
  %364 = vrot.lane.b32.xlu0 %v362, 113
  %v365 = vpop.permute.xlu0 %364
  %367 = vrot.lane.b32.xlu0 %v362, 1
  %v368 = vpop.permute.xlu0 %367
  %vm370 = vcmask 7168
  %v371 = vsel %vm370, %v365, %v368
  %372 = vrot.lane.b32.xlu0 %v362, 127
  %v373 = vpop.permute.xlu0 %372
  %375 = vrot.lane.b32.xlu0 %v362, 15
  %v376 = vpop.permute.xlu0 %375
  %vm378 = vcmask 121856
  %v379 = vsel %vm378, %v373, %v376
  %381 = vset.pattern.permute.xlu0 34
  %382 = vperm.xlu0 %381, %v187
  %v383 = vpop.permute.xlu0 %382
  %v385 = vmul.f32 %v371, %v383
  %386 = vset.pattern.permute.xlu0 35
  %387 = vperm.xlu0 %386, %v187
  %v388 = vpop.permute.xlu0 %387
  %v390 = vmul.f32 %v362, %v388
  %v391 = vadd.f32 %v385, %v390
  %392 = vset.pattern.permute.xlu0 36
  %393 = vperm.xlu0 %392, %v187
  %v394 = vpop.permute.xlu0 %393
  %v396 = vmul.f32 %v379, %v394
  %v397 = vadd.f32 %v391, %v396
  %v398 = vmax.f32 %v397, 1e-30
  %v399 = vlog2.pop %v398
  %v400 = vmul.f32 %v399, 0.6931472
  %402 = vset.pattern.permute.xlu0 37
  %403 = vperm.xlu0 %402, %v190
  %v404 = vpop.permute.xlu0 %403
  %v406 = vmul.f32 %v404, %v400
  %v407 = vmul.f32 %v406, 1.442695
  %v408 = vpow.pop %v407
  %vm409 = vcmask 123904
  %v410 = vsel %vm409, %v408, 0.0
  %411 = vadd.xlane.f32.xlu0 %v410
  %v412 = vpop.xlane.xlu0 %411
  %v413 = vadd.f32 %v412, 1e-16
  %v414 = vrcp.pop %v413
  %v415 = vmul.f32 %v408, %v414
  %416 = vst.msk [vmem:[#allocation2] sm:$0x3] %vm409, %v415
  %v418 = vrot.slane %v415, 6
  %v420 = vmul.f32 %v359, %v418
  %v421 = vadd.f32 %v354, %v420
  %423 = vrot.lane.b32.xlu0 %v421, 113
  %v424 = vpop.permute.xlu0 %423
  %426 = vrot.lane.b32.xlu0 %v421, 1
  %v427 = vpop.permute.xlu0 %426
  %v429 = vsel %vm370, %v424, %v427
  %430 = vrot.lane.b32.xlu0 %v421, 127
  %v431 = vpop.permute.xlu0 %430
  %433 = vrot.lane.b32.xlu0 %v421, 15
  %v434 = vpop.permute.xlu0 %433
  %v436 = vsel %vm378, %v431, %v434
  %v437 = vmul.f32 %v429, %v383
  %v438 = vmul.f32 %v421, %v388
  %v439 = vadd.f32 %v437, %v438
  %v440 = vmul.f32 %v436, %v394
  %v441 = vadd.f32 %v439, %v440
  %v442 = vmax.f32 %v441, 1e-30
  %v443 = vlog2.pop %v442
  %v444 = vmul.f32 %v443, 0.6931472
  %v445 = vmul.f32 %v404, %v444
  %v446 = vmul.f32 %v445, 1.442695
  %v447 = vpow.pop %v446
  %vm448 = vcmask 125954
  %v449 = vsel %vm448, %v447, 0.0
  %450 = vadd.xlane.f32.xlu0 %v449
  %v451 = vpop.xlane.xlu0 %450
  %v452 = vadd.f32 %v451, 1e-16
  %v453 = vrcp.pop %v452
  %v454 = vmul.f32 %v447, %v453
  %455 = vst.msk [vmem:[#allocation2] sm:$0xc] %vm448, %v454
  %v457 = vrot.slane %v454, 6
  %v459 = vmul.f32 %v359, %v457
  %v460 = vadd.f32 %v354, %v459
  %462 = vrot.lane.b32.xlu0 %v460, 113
  %v463 = vpop.permute.xlu0 %462
  %465 = vrot.lane.b32.xlu0 %v460, 1
  %v466 = vpop.permute.xlu0 %465
  %v468 = vsel %vm370, %v463, %v466
  %469 = vrot.lane.b32.xlu0 %v460, 127
  %v470 = vpop.permute.xlu0 %469
  %472 = vrot.lane.b32.xlu0 %v460, 15
  %v473 = vpop.permute.xlu0 %472
  %v475 = vsel %vm378, %v470, %v473
  %v476 = vmul.f32 %v468, %v383
  %v477 = vmul.f32 %v460, %v388
  %v478 = vadd.f32 %v476, %v477
  %v479 = vmul.f32 %v475, %v394
  %v480 = vadd.f32 %v478, %v479
  %v481 = vmax.f32 %v480, 1e-30
  %v482 = vlog2.pop %v481
  %v483 = vmul.f32 %v482, 0.6931472
  %v484 = vmul.f32 %v404, %v483
  %v485 = vmul.f32 %v484, 1.442695
  %v486 = vpow.pop %v485
  %vm487 = vcmask 128004
  %v488 = vsel %vm487, %v486, 0.0
  %489 = vadd.xlane.f32.xlu0 %v488
  %v490 = vpop.xlane.xlu0 %489
  %v491 = vadd.f32 %v490, 1e-16
  %v492 = vrcp.pop %v491
  %v493 = vmul.f32 %v486, %v492
  %494 = vst.msk [vmem:[#allocation2] sm:$0x30] %vm487, %v493
  %v496 = vrot.slane %v493, 6
  %v498 = vmul.f32 %v359, %v496
  %v499 = vadd.f32 %v354, %v498
  %501 = vrot.lane.b32.xlu0 %v499, 113
  %v502 = vpop.permute.xlu0 %501
  %504 = vrot.lane.b32.xlu0 %v499, 1
  %v505 = vpop.permute.xlu0 %504
  %v507 = vsel %vm370, %v502, %v505
  %508 = vrot.lane.b32.xlu0 %v499, 127
  %v509 = vpop.permute.xlu0 %508
  %511 = vrot.lane.b32.xlu0 %v499, 15
  %v512 = vpop.permute.xlu0 %511
  %v514 = vsel %vm378, %v509, %v512
  %v515 = vmul.f32 %v507, %v383
  %v516 = vmul.f32 %v499, %v388
  %v517 = vadd.f32 %v515, %v516
  %v518 = vmul.f32 %v514, %v394
  %v519 = vadd.f32 %v517, %v518
  %v520 = vmax.f32 %v519, 1e-30
  %v521 = vlog2.pop %v520
  %v522 = vmul.f32 %v521, 0.6931472
  %v523 = vmul.f32 %v404, %v522
  %v524 = vmul.f32 %v523, 1.442695
  %v525 = vpow.pop %v524
  %vm526 = vcmask 130054
  %v527 = vsel %vm526, %v525, 0.0
  %528 = vadd.xlane.f32.xlu0 %v527
  %v529 = vpop.xlane.xlu0 %528
  %v530 = vadd.f32 %v529, 1e-16
  %v531 = vrcp.pop %v530
  %v532 = vmul.f32 %v525, %v531
  %533 = vst.msk [vmem:[#allocation2] sm:$0xc0] %vm526, %v532
  %535 = vset.pattern.permute.xlu0 33
  %536 = vperm.xlu0 %535, %v157
  %v537 = vpop.permute.xlu0 %536
  %v539 = vmul.f32 %v537, %v347
  %v540 = vsub.f32 1.0, %v157
  %542 = vset.pattern.permute.xlu0 33
  %543 = vperm.xlu0 %542, %v540
  %v544 = vpop.permute.xlu0 %543
  %v547 = vrot.slane %v532, 6
  %v549 = vmul.f32 %v544, %v547
  %v550 = vadd.f32 %v539, %v549
  %552 = vrot.lane.b32.xlu0 %v550, 113
  %v553 = vpop.permute.xlu0 %552
  %555 = vrot.lane.b32.xlu0 %v550, 1
  %v556 = vpop.permute.xlu0 %555
  %v558 = vsel %vm370, %v553, %v556
  %559 = vrot.lane.b32.xlu0 %v550, 127
  %v560 = vpop.permute.xlu0 %559
  %562 = vrot.lane.b32.xlu0 %v550, 15
  %v563 = vpop.permute.xlu0 %562
  %v565 = vsel %vm378, %v560, %v563
  %567 = vset.pattern.permute.xlu0 34
  %568 = vperm.xlu0 %567, %v189
  %v569 = vpop.permute.xlu0 %568
  %v571 = vmul.f32 %v558, %v569
  %572 = vset.pattern.permute.xlu0 35
  %573 = vperm.xlu0 %572, %v189
  %v574 = vpop.permute.xlu0 %573
  %v576 = vmul.f32 %v550, %v574
  %v577 = vadd.f32 %v571, %v576
  %578 = vset.pattern.permute.xlu0 36
  %579 = vperm.xlu0 %578, %v189
  %v580 = vpop.permute.xlu0 %579
  %v582 = vmul.f32 %v565, %v580
  %v583 = vadd.f32 %v577, %v582
  %v584 = vmax.f32 %v583, 1e-30
  %v585 = vlog2.pop %v584
  %v586 = vmul.f32 %v585, 0.6931472
  %588 = vset.pattern.permute.xlu0 37
  %589 = vperm.xlu0 %588, %v191
  %v590 = vpop.permute.xlu0 %589
  %v592 = vmul.f32 %v590, %v586
  %v593 = vmul.f32 %v592, 1.442695
  %v594 = vpow.pop %v593
  %v595 = vsel %vm409, %v594, 0.0
  %596 = vadd.xlane.f32.xlu0 %v595
  %v597 = vpop.xlane.xlu0 %596
  %v598 = vadd.f32 %v597, 1e-16
  %v599 = vrcp.pop %v598
  %v600 = vmul.f32 %v594, %v599
  %601 = vst.msk [vmem:[#allocation2 + $0x8] sm:$0x3] %vm409, %v600
  %v603 = vrot.slane %v600, 6
  %v605 = vmul.f32 %v544, %v603
  %v606 = vadd.f32 %v539, %v605
  %608 = vrot.lane.b32.xlu0 %v606, 113
  %v609 = vpop.permute.xlu0 %608
  %611 = vrot.lane.b32.xlu0 %v606, 1
  %v612 = vpop.permute.xlu0 %611
  %v614 = vsel %vm370, %v609, %v612
  %615 = vrot.lane.b32.xlu0 %v606, 127
  %v616 = vpop.permute.xlu0 %615
  %618 = vrot.lane.b32.xlu0 %v606, 15
  %v619 = vpop.permute.xlu0 %618
  %v621 = vsel %vm378, %v616, %v619
  %v622 = vmul.f32 %v614, %v569
  %v623 = vmul.f32 %v606, %v574
  %v624 = vadd.f32 %v622, %v623
  %v625 = vmul.f32 %v621, %v580
  %v626 = vadd.f32 %v624, %v625
  %v627 = vmax.f32 %v626, 1e-30
  %v628 = vlog2.pop %v627
  %v629 = vmul.f32 %v628, 0.6931472
  %v630 = vmul.f32 %v590, %v629
  %v631 = vmul.f32 %v630, 1.442695
  %v632 = vpow.pop %v631
  %v633 = vsel %vm448, %v632, 0.0
  %634 = vadd.xlane.f32.xlu0 %v633
  %v635 = vpop.xlane.xlu0 %634
  %v636 = vadd.f32 %v635, 1e-16
  %v637 = vrcp.pop %v636
  %v638 = vmul.f32 %v632, %v637
  %639 = vst.msk [vmem:[#allocation2 + $0x8] sm:$0xc] %vm448, %v638
  %v641 = vrot.slane %v638, 6
  %v643 = vmul.f32 %v544, %v641
  %v644 = vadd.f32 %v539, %v643
  %646 = vrot.lane.b32.xlu0 %v644, 113
  %v647 = vpop.permute.xlu0 %646
  %649 = vrot.lane.b32.xlu0 %v644, 1
  %v650 = vpop.permute.xlu0 %649
  %v652 = vsel %vm370, %v647, %v650
  %653 = vrot.lane.b32.xlu0 %v644, 127
  %v654 = vpop.permute.xlu0 %653
  %656 = vrot.lane.b32.xlu0 %v644, 15
  %v657 = vpop.permute.xlu0 %656
  %v659 = vsel %vm378, %v654, %v657
  %v660 = vmul.f32 %v652, %v569
  %v661 = vmul.f32 %v644, %v574
  %v662 = vadd.f32 %v660, %v661
  %v663 = vmul.f32 %v659, %v580
  %v664 = vadd.f32 %v662, %v663
  %v665 = vmax.f32 %v664, 1e-30
  %v666 = vlog2.pop %v665
  %v667 = vmul.f32 %v666, 0.6931472
  %v668 = vmul.f32 %v590, %v667
  %v669 = vmul.f32 %v668, 1.442695
  %v670 = vpow.pop %v669
  %v671 = vsel %vm487, %v670, 0.0
  %672 = vadd.xlane.f32.xlu0 %v671
  %v673 = vpop.xlane.xlu0 %672
  %v674 = vadd.f32 %v673, 1e-16
  %v675 = vrcp.pop %v674
  %v676 = vmul.f32 %v670, %v675
  %677 = vst.msk [vmem:[#allocation2 + $0x8] sm:$0x30] %vm487, %v676
  %v679 = vrot.slane %v676, 6
  %v681 = vmul.f32 %v544, %v679
  %v682 = vadd.f32 %v539, %v681
  %684 = vrot.lane.b32.xlu0 %v682, 113
  %v685 = vpop.permute.xlu0 %684
  %687 = vrot.lane.b32.xlu0 %v682, 1
  %v688 = vpop.permute.xlu0 %687
  %v690 = vsel %vm370, %v685, %v688
  %691 = vrot.lane.b32.xlu0 %v682, 127
  %v692 = vpop.permute.xlu0 %691
  %694 = vrot.lane.b32.xlu0 %v682, 15
  %v695 = vpop.permute.xlu0 %694
  %v697 = vsel %vm378, %v692, %v695
  %v698 = vmul.f32 %v690, %v569
  %v699 = vmul.f32 %v682, %v574
  %v700 = vadd.f32 %v698, %v699
  %v701 = vmul.f32 %v697, %v580
  %v702 = vadd.f32 %v700, %v701
  %v703 = vmax.f32 %v702, 1e-30
  %v704 = vlog2.pop %v703
  %v705 = vmul.f32 %v704, 0.6931472
  %v706 = vmul.f32 %v590, %v705
  %v707 = vmul.f32 %v706, 1.442695
  %v708 = vpow.pop %v707
  %v709 = vsel %vm526, %v708, 0.0
  %710 = vadd.xlane.f32.xlu0 %v709
  %v711 = vpop.xlane.xlu0 %710
  %v712 = vadd.f32 %v711, 1e-16
  %v713 = vrcp.pop %v712
  %v714 = vmul.f32 %v708, %v713
  %715 = vst.msk [vmem:[#allocation2 + $0x8] sm:$0xc0] %vm526, %v714
  %v716 = vld [vmem:[#allocation2] sm:$0xff]
  %v717 = vld [vmem:[#allocation2 + $0x8] sm:$0xff]
  %v719 = vsel %vm325, %v716, 0
  %v722 = vsel %vm325, %v717, 0
  %724 = vmatprep.subr.mxu0 0.0
  %725 = vmatpush1.msra.mxu0 %v37
  %726 = vmatprep.subr.mxu0 0.0
  %727 = vmatpush1.msra.mxu0 %v38
  %728 = vmatprep.subr.mxu0 0.0
  %729 = vmatpush1.msra.mxu0 0.0
  %730 = vmatprep.subr.mxu0 0.0
  %731 = vmatpush1.msra.mxu0 0.0
  %732 = vmatprep.subr.mxu0 0.0
  %733 = vmatpush1.msra.mxu0 0.0
  %734 = vmatprep.subr.mxu0 0.0
  %735 = vmatpush1.msra.mxu0 0.0
  %736 = vmatprep.subr.mxu0 0.0
  %737 = vmatpush1.msra.mxu0 0.0
  %738 = vmatprep.subr.mxu0 0.0
  %739 = vmatpush1.msra.mxu0 0.0
  %740 = vmatprep.subr.mxu0 0.0
  %741 = vmatpush1.msra.mxu0 0.0
  %742 = vmatprep.subr.mxu0 0.0
  %743 = vmatpush1.msra.mxu0 0.0
  %744 = vmatprep.subr.mxu0 0.0
  %745 = vmatpush1.msra.mxu0 0.0
  %746 = vmatprep.subr.mxu0 0.0
  %747 = vmatpush1.msra.mxu0 0.0
  %748 = vmatprep.subr.mxu0 0.0
  %749 = vmatpush1.msra.mxu0 0.0
  %750 = vmatprep.subr.mxu0 0.0
  %751 = vmatpush1.msra.mxu0 0.0
  %752 = vmatprep.subr.mxu0 0.0
  %753 = vmatpush1.msra.mxu0 0.0
  %754 = vmatprep.subr.mxu0 0.0
  %755 = vmatpush1.msra.mxu0 0.0
  %756 = vmatprep.subr.mxu0 0.0
  %757 = vmatpush1.msra.mxu0 0.0
  %758 = vmatprep.subr.mxu0 0.0
  %759 = vmatpush1.msra.mxu0 0.0
  %760 = vmatprep.subr.mxu0 0.0
  %761 = vmatpush1.msra.mxu0 0.0
  %762 = vmatprep.subr.mxu0 0.0
  %763 = vmatpush1.msra.mxu0 0.0
  %764 = vmatprep.subr.mxu0 0.0
  %765 = vmatpush1.msra.mxu0 0.0
  %766 = vmatprep.subr.mxu0 0.0
  %767 = vmatpush1.msra.mxu0 0.0
  %768 = vmatprep.subr.mxu0 0.0
  %769 = vmatpush1.msra.mxu0 0.0
  %770 = vmatprep.subr.mxu0 0.0
  %771 = vmatpush1.msra.mxu0 0.0
  %772 = vmatprep.subr.mxu0 0.0
  %773 = vmatpush1.msra.mxu0 0.0
  %774 = vmatprep.subr.mxu0 0.0
  %775 = vmatpush1.msra.mxu0 0.0
  %776 = vmatprep.subr.mxu0 0.0
  %777 = vmatpush1.msra.mxu0 0.0
  %778 = vmatprep.subr.mxu0 0.0
  %779 = vmatpush1.msra.mxu0 0.0
  %780 = vmatprep.subr.mxu0 0.0
  %781 = vmatpush1.msra.mxu0 0.0
  %782 = vmatprep.subr.mxu0 0.0
  %783 = vmatpush1.msra.mxu0 0.0
  %784 = vmatprep.subr.mxu0 0.0
  %785 = vmatpush1.msra.mxu0 0.0
  %786 = vmatprep.subr.mxu0 0.0
  %787 = vmatpush1.msra.mxu0 0.0
  %788 = vmatprep.mubr.f32.mxu0 0.0
  %789 = vmatmul.mubr.f32.gmra.mrb[0].mxu0 %v719
  %v790 = vpop.f32.mrb[0].mxu0
  %v791 = vadd.f32 0.0, %v790
  %v792 = vpop.f32.mrb[0].mxu0
  %793 = vmatprep.mubr.f32.mxu0 0.0
  %794 = vmatmul.mubr.f32.gmra.mrb[0].mxu0 %v722
  %v795 = vpop.f32.mrb[0].mxu0
  %v796 = vadd.f32 0.0, %v795
  %v797 = vpop.f32.mrb[0].mxu0
  %798 = vdwg.mxu0
  %799 = vrot.lane.b32.xlu0 %v716, 32
  %v800 = vpop.permute.xlu0 %799
  %801 = vrot.lane.b32.xlu0 %v717, 32
  %v802 = vpop.permute.xlu0 %801
  %v805 = vsel %vm46, %v791, %v800
  %v806 = vsel %vm46, %v796, %v802
  %vm807 = vcmask 392192
  %v808 = vsel %vm807, %v805, 0.0
  %v809 = vsel %vm807, %v806, 0.0
  %810 = vst [vmem:[%s7] sm:$0xff] %v808
  %811 = vst [vmem:[%s7 + $0x8] sm:$0xff] %v809
  // Predicated region
  $region30: #{ntm_read_head_seq.1} parent=0 // pred_check
    _
  $region31: #{ntm_read_head_seq.1} parent=0 // pred_check_branch
    %813 = sbr.rel (0) target = $region33
  $region32: #{ntm_read_head_seq.1} parent=0 // pred_region
    _
  $region33: #{ntm_read_head_seq.1} parent=0 // pred_fallthru
    _
  // Predicated region
  $region34: #{ntm_read_head_seq.1} parent=0 // pred_check
    _
  $region35: #{ntm_read_head_seq.1} parent=0 // pred_check_branch
    %815 = sbr.rel (0) target = $region37
  $region36: #{ntm_read_head_seq.1} parent=0 // pred_region
    _
  $region37: #{ntm_read_head_seq.1} parent=0 // pred_fallthru
    _

</llo_original>
